<compile_context>
chip_gen: v7x
topology: tpu7x:2x2x1
jax: 0.10.0
libtpu: 0.0.40
codegen_flags: <defaults>
</compile_context>

<pallas_src>
import functools

import numpy as np
import jax
import jax.numpy as jnp
from jax.experimental import pallas as pl
from jax.experimental.pallas import tpu as pltpu


_LOC_ROWS = 4
_LANDM_ROWS = 10
_TGT_ROWS = _LOC_ROWS + _LANDM_ROWS      # 14: conf_t row in `targ`, conf rows start here in `pred`


# ---------------------------------------------------------------------------
# Pallas kernel (one image per grid step)
# ---------------------------------------------------------------------------
def _multibox_loss_kernel(pred_ref, targ_ref, out_ref, lc_col_ref, *,
                          negpos_ratio, num_classes, num_priors, j_tile):
    kh = pred_ref.shape[1]
    p = pred_ref.shape[2]
    p_pad = lc_col_ref.shape[0]

    pred = pred_ref[0]                                  # (KH, P) f32
    targ = targ_ref[0]                                  # (KH, P) f32

    conf_t = targ[_TGT_ROWS:_TGT_ROWS + 1, :]           # (1, P) float-coded labels {-1,0,1}
    pos = conf_t != 0.0                                 # matched to a face (incl. label -1)
    pos1 = conf_t > 0.0                                 # matched with valid landmarks

    # ---- masked smooth-L1 over the packed loc(0:4)+landm(4:14) rows, one pass ----
    d = pred - targ
    ad = jnp.abs(d)
    sl1 = jnp.where(ad < 1.0, 0.5 * d * d, ad - 0.5)
    row = jax.lax.broadcasted_iota(jnp.int32, (kh, p), 0)
    loss_l = jnp.sum(jnp.where((row < _LOC_ROWS) & pos, sl1, 0.0))
    loss_landm = jnp.sum(
        jnp.where((row >= _LOC_ROWS) & (row < _TGT_ROWS) & pos1, sl1, 0.0))

    # ---- classification: single row-stable LSE + direct 2-way gather ----
    conf = pred[_TGT_ROWS:_TGT_ROWS + num_classes, :]   # (C, P)
    cmax = jnp.max(conf, axis=0, keepdims=True)
    lse = jnp.log(jnp.sum(jnp.exp(conf - cmax), axis=0, keepdims=True)) + cmax
    # conf_t[pos] = 1 in the reference, so the gathered logit is class 1 for
    # positives and class 0 otherwise (valid for any C >= 2).
    gathered = jnp.where(pos, conf[1:2, :], conf[0:1, :])
    ce = lse - gathered                                 # (1, P) per-prior CE
    lc = jnp.where(pos, 0.0, ce)                        # ranking loss (positives zeroed)

    # ---- hard-negative mining: j-tiled pairwise descending rank, MXU reduce ----
    # rank[i] = #{ j : lc[j] > lc[i]  or  (lc[j] == lc[i] and j < i) }  (stable sort rank)
    if p_pad > p:                                       # pad rows never count as "before"
        lc_col_ref[...] = jnp.full((p_pad, 1), -jnp.inf, dtype=jnp.float32)
    lc_col_ref[0:p, :] = lc.reshape(p, 1)               # one lanes->sublanes relayout

    ii = jax.lax.broadcasted_iota(jnp.int32, (1, p), 1)        # prior index i (lanes)
    jj_loc = jax.lax.broadcasted_iota(jnp.int32, (j_tile, 1), 0)
    ones8 = jnp.ones((8, j_tile), dtype=jnp.bfloat16)
    n_tiles = p_pad // j_tile

    def body(t, rank_acc):
        jo = pl.multiple_of(t * j_tile, j_tile)
        lj = lc_col_ref[pl.ds(jo, j_tile), :]                  # (Tj, 1)
        jj = jj_loc + jo                                       # (Tj, 1)
        before = (lj > lc) | ((lj == lc) & (jj < ii))          # (Tj, P) bool
        # j-reduction on the MXU (bf16 0/1 inputs, exact f32 accumulation)
        part = jnp.dot(ones8, before.astype(jnp.bfloat16),
                       preferred_element_type=jnp.float32)[0:1, :]
        return rank_acc + part

    rank = jax.lax.fori_loop(0, n_tiles, body,
                             jnp.zeros((1, p), jnp.float32),
                             unroll=n_tiles <= 8)

    num_pos = jnp.sum(pos.astype(jnp.float32))
    num_pos1 = jnp.sum(pos1.astype(jnp.float32))
    # clamp against the *total* prior count, not the block extent
    num_neg = jnp.minimum(negpos_ratio * num_pos, float(num_priors - 1))
    sel = pos | (rank < num_neg)
    loss_c = jnp.sum(jnp.where(sel, ce, 0.0))

    # ---- lane-packed per-image partial sums (cross-image reduce in wrapper) ----
    lane = jax.lax.broadcasted_iota(jnp.int32, (1, 1, 128), 2)
    out_ref[...] = (jnp.where(lane == 0, loss_l, 0.0)
                    + jnp.where(lane == 1, loss_c, 0.0)
                    + jnp.where(lane == 2, loss_landm, 0.0)
                    + jnp.where(lane == 3, num_pos, 0.0)
                    + jnp.where(lane == 4, num_pos1, 0.0))


# ---------------------------------------------------------------------------
# wrapper
# ---------------------------------------------------------------------------
def _pack_prior_last(loc_data, conf_data, landm_data, loc_t, conf_t, landm_t):
    """One fused concat+transpose+pad per slab -> prior-last, >=8 sublanes."""
    n, p, c = conf_data.shape
    pred = jnp.concatenate([loc_data, landm_data, conf_data], axis=-1)      # (N,P,14+C)
    targ = jnp.concatenate(
        [loc_t, landm_t, conf_t[..., None].astype(loc_t.dtype)], axis=-1)   # (N,P,15)
    pred = jnp.transpose(pred, (0, 2, 1)).astype(jnp.float32)               # (N,14+C,P)
    targ = jnp.transpose(targ, (0, 2, 1)).astype(jnp.float32)               # (N,15,P)
    kh = max(_TGT_ROWS + c, _TGT_ROWS + 1)
    kh = ((kh + 7) // 8) * 8                                                # sublane-tile aligned
    pred = jnp.pad(pred, ((0, 0), (0, kh - pred.shape[1]), (0, 0)))
    targ = jnp.pad(targ, ((0, 0), (0, kh - targ.shape[1]), (0, 0)))
    return pred, targ, kh


def _multibox_loss_pallas(loc_data, conf_data, landm_data,
                          loc_t, conf_t, landm_t, negpos_ratio):
    """loc_data (N,P,4), conf_data (N,P,C), landm_data (N,P,10) — PyTorch layout."""
    n, p, c = conf_data.shape
    pred, targ, kh = _pack_prior_last(loc_data, conf_data, landm_data,
                                      loc_t, conf_t, landm_t)

    # j-tile of the pairwise-rank loop: big when P is big, >=2 tiles for small P
    j_tile = 512 if p >= 1024 else 128
    p_pad = ((p + j_tile - 1) // j_tile) * j_tile

    kernel = functools.partial(
        _multibox_loss_kernel, negpos_ratio=negpos_ratio, num_classes=c,
        num_priors=p, j_tile=j_tile)

    cost = pl.CostEstimate(
        flops=int(n * (4 * p_pad * p + 16 * kh * p)),        # pairwise compares dominate
        transcendentals=int(n * (c + 1) * p),                # exp/log of the softmax
        bytes_accessed=int(pred.size * 4 + targ.size * 4 + n * 128 * 4))

    per_image = pl.pallas_call(
        kernel,
        out_shape=jax.ShapeDtypeStruct((n, 1, 128), jnp.float32),
        grid=(n,),
        in_specs=[pl.BlockSpec((1, kh, p), lambda i: (i, 0, 0)),
                  pl.BlockSpec((1, kh, p), lambda i: (i, 0, 0))],
        out_specs=pl.BlockSpec((1, 1, 128), lambda i: (i, 0, 0)),
        scratch_shapes=[pltpu.VMEM((p_pad, 1), jnp.float32)],
        compiler_params=pltpu.CompilerParams(
            dimension_semantics=("parallel",),               # pipelining; megacore on v7x
            vmem_limit_bytes=48 * 1024 * 1024),
        cost_estimate=cost,
    )(pred, targ)

    sums = jnp.sum(per_image, axis=(0, 1))                   # (128,) tiny cross-image reduce
    n_box = jnp.maximum(sums[3], 1.0)
    n_lm = jnp.maximum(sums[4], 1.0)
    return sums[0] / n_box, sums[1] / n_box, sums[2] / n_lm


multibox_loss_pallas = jax.jit(_multibox_loss_pallas, static_argnums=(6,))


# ---------------------------------------------------------------------------
# plain-JAX glue: the standard RetinaFace `match` / encode helpers
# (data-dependent gather/scatter target assignment — not the kernel hot path)
# ---------------------------------------------------------------------------
def point_form(priors):
    return jnp.concatenate([priors[:, :2] - priors[:, 2:] / 2,
                            priors[:, :2] + priors[:, 2:] / 2], axis=1)


def jaccard(box_a, box_b):
    max_xy = jnp.minimum(box_a[:, None, 2:], box_b[None, :, 2:])
    min_xy = jnp.maximum(box_a[:, None, :2], box_b[None, :, :2])
    inter_wh = jnp.clip(max_xy - min_xy, 0.0)
    inter = inter_wh[..., 0] * inter_wh[..., 1]
    area_a = ((box_a[:, 2] - box_a[:, 0]) * (box_a[:, 3] - box_a[:, 1]))[:, None]
    area_b = ((box_b[:, 2] - box_b[:, 0]) * (box_b[:, 3] - box_b[:, 1]))[None, :]
    return inter / (area_a + area_b - inter)


def encode(matched, priors, variances):
    g_cxcy = (matched[:, :2] + matched[:, 2:]) / 2 - priors[:, :2]
    g_cxcy = g_cxcy / (variances[0] * priors[:, 2:])
    g_wh = (matched[:, 2:] - matched[:, :2]) / priors[:, 2:]
    g_wh = jnp.log(g_wh) / variances[1]
    return jnp.concatenate([g_cxcy, g_wh], axis=1)


def encode_landm(matched, priors, variances):
    m = matched.reshape(-1, 5, 2)
    pc = priors[:, None, :2]
    pwh = priors[:, None, 2:]
    g = (m - pc) / (variances[0] * pwh)
    return g.reshape(m.shape[0], 10)


def match_one(threshold, truths, priors, variances, labels, landms):
    # TODO(synk): data-dependent scatter (index_fill_ / sequential overwrite) has no
    # clean Pallas tile expression; kept as plain-JAX glue outside the kernel.
    overlaps = jaccard(truths, point_form(priors))            # (G, P)
    best_prior_overlap = overlaps.max(axis=1)
    best_prior_idx = overlaps.argmax(axis=1)
    valid_gt = best_prior_overlap >= 0.2
    any_valid = jnp.any(valid_gt)

    best_truth_overlap = overlaps.max(axis=0)                  # (P,)
    best_truth_idx = overlaps.argmax(axis=0)                   # (P,)

    # index_fill_ on the *filtered* best prior indices with overlap 2
    fill_idx = jnp.where(valid_gt, best_prior_idx, priors.shape[0])  # OOB -> dropped
    best_truth_overlap = best_truth_overlap.at[fill_idx].set(2.0, mode='drop')

    # sequential overwrite loop (matches torch semantics: later GT wins)
    for j in range(truths.shape[0]):
        best_truth_idx = best_truth_idx.at[best_prior_idx[j]].set(j)

    matches = truths[best_truth_idx]
    conf = labels[best_truth_idx]
    conf = jnp.where(best_truth_overlap < threshold, 0.0, conf)
    conf = jnp.where(any_valid, conf, 0.0)     # "no valid gt" branch of match()
    loc = encode(matches, priors, variances)
    landm = encode_landm(landms[best_truth_idx], priors, variances)
    return loc, conf.astype(jnp.int32), landm


# ---------------------------------------------------------------------------
# pure-JAX reference (mirrors the PyTorch forward) for validation
# ---------------------------------------------------------------------------
def multibox_loss_ref(loc_data, conf_data, landm_data,
                      loc_t, conf_t, landm_t, negpos, num_classes):
    num, num_priors, _ = loc_data.shape
    pos1 = conf_t > 0
    pos = conf_t != 0

    def sl1(p, t):
        d = p - t
        ad = jnp.abs(d)
        return jnp.where(ad < 1.0, 0.5 * d * d, ad - 0.5)

    loss_landm = jnp.sum(sl1(landm_data, landm_t) * pos1[..., None])
    loss_l = jnp.sum(sl1(loc_data, loc_t) * pos[..., None])

    conf_t1 = jnp.where(pos, 1, 0)
    batch_conf = conf_data.reshape(-1, num_classes)
    x_max = jnp.max(batch_conf)
    lse = jnp.log(jnp.sum(jnp.exp(batch_conf - x_max), axis=1)) + x_max
    gathered = jnp.take_along_axis(batch_conf, conf_t1.reshape(-1, 1), axis=1)[:, 0]
    loss_c = jnp.where(pos.reshape(-1), 0.0, lse - gathered).reshape(num, -1)

    loss_idx = jnp.argsort(-loss_c, axis=1)
    idx_rank = jnp.argsort(loss_idx, axis=1)
    num_pos = jnp.sum(pos.astype(jnp.int32), axis=1, keepdims=True)
    num_neg = jnp.minimum(negpos * num_pos, num_priors - 1)
    neg = idx_rank < num_neg
    sel = pos | neg

    row_max = jnp.max(conf_data, axis=2, keepdims=True)
    lse_row = jnp.log(jnp.sum(jnp.exp(conf_data - row_max), axis=2)) + row_max[..., 0]
    g2 = jnp.take_along_axis(conf_data, conf_t1[..., None], axis=2)[..., 0]
    loss_c_sum = jnp.sum(jnp.where(sel, lse_row - g2, 0.0))

    N = jnp.maximum(jnp.sum(num_pos).astype(jnp.float32), 1.0)
    N1 = jnp.maximum(jnp.sum(pos1.astype(jnp.int32)).astype(jnp.float32), 1.0)
    return loss_l / N, loss_c_sum / N, loss_landm / N1


# ---------------------------------------------------------------------------
if __name__ == "__main__":
    num = 2                  # batch
    num_priors = 256         # 16x16 grid of priors
    num_classes = 2
    num_gt = 3
    overlap_thresh = 0.35
    neg_pos = 7
    variances = (0.1, 0.2)

    key = jax.random.PRNGKey(0)
    k1, k2, k3, k4 = jax.random.split(key, 4)

    # priors (cx, cy, w, h), normalized
    g = (jnp.arange(16, dtype=jnp.float32) + 0.5) / 16.0
    cx, cy = jnp.meshgrid(g, g, indexing="ij")
    priors = jnp.stack([cx.reshape(-1), cy.reshape(-1),
                        jnp.full((num_priors,), 0.15),
                        jnp.full((num_priors,), 0.15)], axis=1)

    # ground-truth targets: (num, num_gt, 15) = [x1,y1,x2,y2, 10 landm, label]
    centers = np.array([[[3, 3], [8, 10], [12, 5]],
                        [[2, 12], [6, 6], [13, 13]]], dtype=np.float32)
    cxy = (centers + 0.5) / 16.0
    half = 0.09
    boxes = np.concatenate([cxy - half, cxy + half], axis=-1)
    labels = np.array([[1.0, 1.0, -1.0], [1.0, -1.0, 1.0]], dtype=np.float32)
    gt_landms = jax.random.uniform(k4, (num, num_gt, 10), dtype=jnp.float32)
    targets = jnp.concatenate(
        [jnp.asarray(boxes), gt_landms, jnp.asarray(labels)[..., None]], axis=-1)

    # network predictions
    loc_data = 0.1 * jax.random.normal(k1, (num, num_priors, 4), dtype=jnp.float32)
    conf_data = jax.random.normal(k2, (num, num_priors, num_classes), dtype=jnp.float32)
    landm_data = 0.1 * jax.random.normal(k3, (num, num_priors, 10), dtype=jnp.float32)

    # match step (plain-JAX glue, per image)
    loc_ts, conf_ts, landm_ts = [], [], []
    for idx in range(num):
        t = targets[idx]
        l, c, lm = match_one(overlap_thresh, t[:, :4], priors, variances,
                             t[:, -1], t[:, 4:14])
        loc_ts.append(l); conf_ts.append(c); landm_ts.append(lm)
    loc_t = jnp.stack(loc_ts)
    conf_t = jnp.stack(conf_ts)
    landm_t = jnp.stack(landm_ts)

    # Pallas kernel
    out = multibox_loss_pallas(loc_data, conf_data, landm_data,
                               loc_t, conf_t, landm_t, neg_pos)
    out = jax.block_until_ready(out)

    # validate against the pure-JAX reference of the PyTorch forward
    ref = multibox_loss_ref(loc_data, conf_data, landm_data,
                            loc_t, conf_t, landm_t, neg_pos, num_classes)
    for a, b in zip(out, ref):
        np.testing.assert_allclose(np.asarray(a), np.asarray(b), rtol=2e-3, atol=2e-3)

    print("KERNEL_OK")
</pallas_src>

<mosaic_0001>
module attributes {stable_mosaic.version = 11 : i64} {
  func.func @_multibox_loss_kernel(%arg0: i32, %arg1: memref<1x16x256xf32, #tpu.memory_space<vmem>>, %arg2: memref<1x16x256xf32, #tpu.memory_space<vmem>>, %arg3: memref<1x1x128xf32, #tpu.memory_space<vmem>>, %arg4: memref<256x1xf32, #tpu.memory_space<vmem>>) attributes {dimension_semantics = [#tpu.dimension_semantics<parallel>], iteration_bounds = array<i64: 2>, scalar_prefetch = 0 : i64, scratch_operands = 1 : i64, tpu.core_type = #tpu.core_type<tc>, window_params = [{transform_indices = @transform_0, window_bounds = array<i64: 1, 16, 256>}, {transform_indices = @transform_1, window_bounds = array<i64: 1, 16, 256>}, {transform_indices = @transform_2, window_bounds = array<i64: 1, 1, 128>}]} {
    %c0 = arith.constant 0 : index
    %c0_0 = arith.constant 0 : index
    %c0_1 = arith.constant 0 : index
    %0 = vector.load %arg1[%c0, %c0_0, %c0_1] : memref<1x16x256xf32, #tpu.memory_space<vmem>>, vector<1x16x256xf32>
    %1 = vector.shape_cast %0 : vector<1x16x256xf32> to vector<16x256xf32>
    %c0_2 = arith.constant 0 : index
    %c0_3 = arith.constant 0 : index
    %c0_4 = arith.constant 0 : index
    %2 = vector.load %arg2[%c0_2, %c0_3, %c0_4] : memref<1x16x256xf32, #tpu.memory_space<vmem>>, vector<1x16x256xf32>
    %3 = vector.shape_cast %2 : vector<1x16x256xf32> to vector<16x256xf32>
    %4 = vector.extract_strided_slice %3 {offsets = [14, 0], sizes = [1, 256], strides = [1, 1]} : vector<16x256xf32> to vector<1x256xf32>
    %cst = arith.constant 0.000000e+00 : f32
    %5 = vector.broadcast %cst : f32 to vector<1x256xf32>
    %6 = arith.cmpf one, %4, %5 : vector<1x256xf32>
    %cst_5 = arith.constant 0.000000e+00 : f32
    %7 = vector.broadcast %cst_5 : f32 to vector<1x256xf32>
    %8 = arith.cmpf ogt, %4, %7 : vector<1x256xf32>
    %9 = arith.subf %1, %3 : vector<16x256xf32>
    %10 = math.absf %9 : vector<16x256xf32>
    %cst_6 = arith.constant 1.000000e+00 : f32
    %11 = vector.broadcast %cst_6 : f32 to vector<16x256xf32>
    %12 = arith.cmpf olt, %10, %11 : vector<16x256xf32>
    %cst_7 = arith.constant 5.000000e-01 : f32
    %13 = vector.broadcast %cst_7 : f32 to vector<16x256xf32>
    %14 = arith.mulf %13, %9 : vector<16x256xf32>
    %15 = arith.mulf %14, %9 : vector<16x256xf32>
    %cst_8 = arith.constant 5.000000e-01 : f32
    %16 = vector.broadcast %cst_8 : f32 to vector<16x256xf32>
    %17 = arith.subf %10, %16 : vector<16x256xf32>
    %18 = arith.select %12, %15, %17 : vector<16x256xi1>, vector<16x256xf32>
    %19 = tpu.iota {dimensions = array<i32: 0>} : vector<16x256xi32>
    %c4_i32 = arith.constant 4 : i32
    %20 = vector.broadcast %c4_i32 : i32 to vector<16x256xi32>
    %21 = arith.cmpi slt, %19, %20 : vector<16x256xi32>
    %22 = vector.broadcast %6 : vector<1x256xi1> to vector<16x256xi1>
    %23 = arith.andi %21, %22 : vector<16x256xi1>
    %cst_9 = arith.constant 0.000000e+00 : f32
    %24 = vector.broadcast %cst_9 : f32 to vector<16x256xf32>
    %25 = arith.select %23, %18, %24 : vector<16x256xi1>, vector<16x256xf32>
    %26 = vector.shape_cast %25 : vector<16x256xf32> to vector<1x16x256xf32>
    %cst_10 = arith.constant dense<0.000000e+00> : vector<1xf32>
    %27 = vector.multi_reduction <add>, %26, %cst_10 [1, 2] : vector<1x16x256xf32> to vector<1xf32>
    %28 = vector.shape_cast %27 : vector<1xf32> to vector<1x1x1xf32>
    %29 = vector.extract %28[0, 0, 0] : f32 from vector<1x1x1xf32>
    %c4_i32_11 = arith.constant 4 : i32
    %30 = vector.broadcast %c4_i32_11 : i32 to vector<16x256xi32>
    %31 = arith.cmpi sge, %19, %30 : vector<16x256xi32>
    %c14_i32 = arith.constant 14 : i32
    %32 = vector.broadcast %c14_i32 : i32 to vector<16x256xi32>
    %33 = arith.cmpi slt, %19, %32 : vector<16x256xi32>
    %34 = arith.andi %31, %33 : vector<16x256xi1>
    %35 = vector.broadcast %8 : vector<1x256xi1> to vector<16x256xi1>
    %36 = arith.andi %34, %35 : vector<16x256xi1>
    %cst_12 = arith.constant 0.000000e+00 : f32
    %37 = vector.broadcast %cst_12 : f32 to vector<16x256xf32>
    %38 = arith.select %36, %18, %37 : vector<16x256xi1>, vector<16x256xf32>
    %39 = vector.shape_cast %38 : vector<16x256xf32> to vector<1x16x256xf32>
    %cst_13 = arith.constant dense<0.000000e+00> : vector<1xf32>
    %40 = vector.multi_reduction <add>, %39, %cst_13 [1, 2] : vector<1x16x256xf32> to vector<1xf32>
    %41 = vector.shape_cast %40 : vector<1xf32> to vector<1x1x1xf32>
    %42 = vector.extract %41[0, 0, 0] : f32 from vector<1x1x1xf32>
    %43 = vector.extract_strided_slice %1 {offsets = [14, 0], sizes = [2, 256], strides = [1, 1]} : vector<16x256xf32> to vector<2x256xf32>
    %cst_14 = arith.constant dense<0xFF800000> : vector<256xf32>
    %44 = vector.multi_reduction <maximumf>, %43, %cst_14 [0] : vector<2x256xf32> to vector<256xf32>
    %45 = vector.shape_cast %44 : vector<256xf32> to vector<1x256xf32>
    %46 = vector.broadcast %45 : vector<1x256xf32> to vector<2x256xf32>
    %47 = arith.subf %43, %46 : vector<2x256xf32>
    %48 = math.exp %47 : vector<2x256xf32>
    %cst_15 = arith.constant dense<0.000000e+00> : vector<256xf32>
    %49 = vector.multi_reduction <add>, %48, %cst_15 [0] : vector<2x256xf32> to vector<256xf32>
    %50 = vector.shape_cast %49 : vector<256xf32> to vector<1x256xf32>
    %51 = math.log %50 : vector<1x256xf32>
    %52 = arith.addf %51, %45 : vector<1x256xf32>
    %53 = vector.extract_strided_slice %43 {offsets = [1, 0], sizes = [1, 256], strides = [1, 1]} : vector<2x256xf32> to vector<1x256xf32>
    %54 = vector.extract_strided_slice %43 {offsets = [0, 0], sizes = [1, 256], strides = [1, 1]} : vector<2x256xf32> to vector<1x256xf32>
    %55 = arith.select %6, %53, %54 : vector<1x256xi1>, vector<1x256xf32>
    %56 = arith.subf %52, %55 : vector<1x256xf32>
    %cst_16 = arith.constant 0.000000e+00 : f32
    %57 = vector.broadcast %cst_16 : f32 to vector<1x256xf32>
    %58 = arith.select %6, %57, %56 : vector<1x256xi1>, vector<1x256xf32>
    %59 = vector.shape_cast %58 : vector<1x256xf32> to vector<256x1xf32>
    %c0_17 = arith.constant 0 : index
    %c0_18 = arith.constant 0 : index
    %60 = vector.load %arg4[%c0_17, %c0_18] : memref<256x1xf32, #tpu.memory_space<vmem>>, vector<256x1xf32>
    tpu.vector_store %arg4[%c0_17, %c0_18], %59 {strides = array<i32>} : memref<256x1xf32, #tpu.memory_space<vmem>>, vector<256x1xf32>,
    %61 = tpu.iota {dimensions = array<i32: 1>} : vector<1x256xi32>
    %62 = tpu.iota {dimensions = array<i32: 0>} : vector<128x1xi32>
    %cst_19 = arith.constant 1.000000e+00 : bf16
    %63 = vector.broadcast %cst_19 : bf16 to vector<8x128xbf16>
    %cst_20 = arith.constant 0.000000e+00 : f32
    %64 = vector.broadcast %cst_20 : f32 to vector<1x256xf32>
    %c0_i32 = arith.constant 0 : i32
    %c128_i32 = arith.constant 128 : i32
    %65 = arith.muli %c0_i32, %c128_i32 : i32
    %66 = tpu.assume_multiple %65, 128 : i32
    %67 = arith.index_cast %66 : i32 to index
    %c0_21 = arith.constant 0 : index
    %68 = vector.load %arg4[%67, %c0_21] : memref<256x1xf32, #tpu.memory_space<vmem>>, vector<128x1xf32>
    %69 = vector.broadcast %66 : i32 to vector<128x1xi32>
    %70 = arith.addi %62, %69 : vector<128x1xi32>
    %71 = vector.broadcast %68 : vector<128x1xf32> to vector<128x256xf32>
    %72 = vector.broadcast %58 : vector<1x256xf32> to vector<128x256xf32>
    %73 = arith.cmpf ogt, %71, %72 : vector<128x256xf32>
    %74 = vector.broadcast %68 : vector<128x1xf32> to vector<128x256xf32>
    %75 = vector.broadcast %58 : vector<1x256xf32> to vector<128x256xf32>
    %76 = arith.cmpf oeq, %74, %75 : vector<128x256xf32>
    %77 = vector.broadcast %70 : vector<128x1xi32> to vector<128x256xi32>
    %78 = vector.broadcast %61 : vector<1x256xi32> to vector<128x256xi32>
    %79 = arith.cmpi slt, %77, %78 : vector<128x256xi32>
    %80 = arith.andi %76, %79 : vector<128x256xi1>
    %81 = arith.ori %73, %80 : vector<128x256xi1>
    %82 = arith.extui %81 : vector<128x256xi1> to vector<128x256xi32>
    %83 = arith.sitofp %82 : vector<128x256xi32> to vector<128x256xf32>
    %84 = arith.truncf %83 : vector<128x256xf32> to vector<128x256xbf16>
    %cst_22 = arith.constant dense<0.000000e+00> : vector<8x256xf32>
    %85 = tpu.matmul %63, %84, %cst_22 {dimension_numbers = #tpu.dot_dimension_numbers<[1], [0], [0], [1], [0, 0, 1, 1], [], []>} : vector<8x128xbf16>, vector<128x256xbf16>, vector<8x256xf32> -> vector<8x256xf32>
    %86 = vector.extract_strided_slice %85 {offsets = [0, 0], sizes = [1, 256], strides = [1, 1]} : vector<8x256xf32> to vector<1x256xf32>
    %87 = arith.addf %64, %86 : vector<1x256xf32>
    %c1_i32 = arith.constant 1 : i32
    %c128_i32_23 = arith.constant 128 : i32
    %88 = arith.muli %c1_i32, %c128_i32_23 : i32
    %89 = tpu.assume_multiple %88, 128 : i32
    %90 = arith.index_cast %89 : i32 to index
    %c0_24 = arith.constant 0 : index
    %91 = vector.load %arg4[%90, %c0_24] : memref<256x1xf32, #tpu.memory_space<vmem>>, vector<128x1xf32>
    %92 = vector.broadcast %89 : i32 to vector<128x1xi32>
    %93 = arith.addi %62, %92 : vector<128x1xi32>
    %94 = vector.broadcast %91 : vector<128x1xf32> to vector<128x256xf32>
    %95 = vector.broadcast %58 : vector<1x256xf32> to vector<128x256xf32>
    %96 = arith.cmpf ogt, %94, %95 : vector<128x256xf32>
    %97 = vector.broadcast %91 : vector<128x1xf32> to vector<128x256xf32>
    %98 = vector.broadcast %58 : vector<1x256xf32> to vector<128x256xf32>
    %99 = arith.cmpf oeq, %97, %98 : vector<128x256xf32>
    %100 = vector.broadcast %93 : vector<128x1xi32> to vector<128x256xi32>
    %101 = vector.broadcast %61 : vector<1x256xi32> to vector<128x256xi32>
    %102 = arith.cmpi slt, %100, %101 : vector<128x256xi32>
    %103 = arith.andi %99, %102 : vector<128x256xi1>
    %104 = arith.ori %96, %103 : vector<128x256xi1>
    %105 = arith.extui %104 : vector<128x256xi1> to vector<128x256xi32>
    %106 = arith.sitofp %105 : vector<128x256xi32> to vector<128x256xf32>
    %107 = arith.truncf %106 : vector<128x256xf32> to vector<128x256xbf16>
    %cst_25 = arith.constant dense<0.000000e+00> : vector<8x256xf32>
    %108 = tpu.matmul %63, %107, %cst_25 {dimension_numbers = #tpu.dot_dimension_numbers<[1], [0], [0], [1], [0, 0, 1, 1], [], []>} : vector<8x128xbf16>, vector<128x256xbf16>, vector<8x256xf32> -> vector<8x256xf32>
    %109 = vector.extract_strided_slice %108 {offsets = [0, 0], sizes = [1, 256], strides = [1, 1]} : vector<8x256xf32> to vector<1x256xf32>
    %110 = arith.addf %87, %109 : vector<1x256xf32>
    %c2_i32 = arith.constant 2 : i32
    %111 = arith.extui %6 : vector<1x256xi1> to vector<1x256xi32>
    %112 = arith.sitofp %111 : vector<1x256xi32> to vector<1x256xf32>
    %113 = vector.shape_cast %112 : vector<1x256xf32> to vector<1x1x256xf32>
    %cst_26 = arith.constant dense<0.000000e+00> : vector<1xf32>
    %114 = vector.multi_reduction <add>, %113, %cst_26 [1, 2] : vector<1x1x256xf32> to vector<1xf32>
    %115 = vector.shape_cast %114 : vector<1xf32> to vector<1x1x1xf32>
    %116 = vector.extract %115[0, 0, 0] : f32 from vector<1x1x1xf32>
    %117 = arith.extui %8 : vector<1x256xi1> to vector<1x256xi32>
    %118 = arith.sitofp %117 : vector<1x256xi32> to vector<1x256xf32>
    %119 = vector.shape_cast %118 : vector<1x256xf32> to vector<1x1x256xf32>
    %cst_27 = arith.constant dense<0.000000e+00> : vector<1xf32>
    %120 = vector.multi_reduction <add>, %119, %cst_27 [1, 2] : vector<1x1x256xf32> to vector<1xf32>
    %121 = vector.shape_cast %120 : vector<1xf32> to vector<1x1x1xf32>
    %122 = vector.extract %121[0, 0, 0] : f32 from vector<1x1x1xf32>
    %cst_28 = arith.constant 7.000000e+00 : f32
    %123 = arith.mulf %cst_28, %116 : f32
    %cst_29 = arith.constant 2.550000e+02 : f32
    %124 = arith.minimumf %123, %cst_29 : f32
    %125 = vector.broadcast %124 : f32 to vector<1x256xf32>
    %126 = arith.cmpf olt, %110, %125 : vector<1x256xf32>
    %127 = arith.ori %6, %126 : vector<1x256xi1>
    %cst_30 = arith.constant 0.000000e+00 : f32
    %128 = vector.broadcast %cst_30 : f32 to vector<1x256xf32>
    %129 = arith.select %127, %56, %128 : vector<1x256xi1>, vector<1x256xf32>
    %130 = vector.shape_cast %129 : vector<1x256xf32> to vector<1x1x256xf32>
    %cst_31 = arith.constant dense<0.000000e+00> : vector<1xf32>
    %131 = vector.multi_reduction <add>, %130, %cst_31 [1, 2] : vector<1x1x256xf32> to vector<1xf32>
    %132 = vector.shape_cast %131 : vector<1xf32> to vector<1x1x1xf32>
    %133 = vector.extract %132[0, 0, 0] : f32 from vector<1x1x1xf32>
    %134 = tpu.iota {dimensions = array<i32: 2>} : vector<1x1x128xi32>
    %c0_i32_32 = arith.constant 0 : i32
    %135 = vector.broadcast %c0_i32_32 : i32 to vector<1x1x128xi32>
    %136 = arith.cmpi eq, %134, %135 : vector<1x1x128xi32>
    %cst_33 = arith.constant 0.000000e+00 : f32
    %137 = vector.broadcast %29 : f32 to vector<1x1x128xf32>
    %138 = vector.broadcast %cst_33 : f32 to vector<1x1x128xf32>
    %139 = arith.select %136, %137, %138 : vector<1x1x128xi1>, vector<1x1x128xf32>
    %c1_i32_34 = arith.constant 1 : i32
    %140 = vector.broadcast %c1_i32_34 : i32 to vector<1x1x128xi32>
    %141 = arith.cmpi eq, %134, %140 : vector<1x1x128xi32>
    %cst_35 = arith.constant 0.000000e+00 : f32
    %142 = vector.broadcast %133 : f32 to vector<1x1x128xf32>
    %143 = vector.broadcast %cst_35 : f32 to vector<1x1x128xf32>
    %144 = arith.select %141, %142, %143 : vector<1x1x128xi1>, vector<1x1x128xf32>
    %145 = arith.addf %139, %144 : vector<1x1x128xf32>
    %c2_i32_36 = arith.constant 2 : i32
    %146 = vector.broadcast %c2_i32_36 : i32 to vector<1x1x128xi32>
    %147 = arith.cmpi eq, %134, %146 : vector<1x1x128xi32>
    %cst_37 = arith.constant 0.000000e+00 : f32
    %148 = vector.broadcast %42 : f32 to vector<1x1x128xf32>
    %149 = vector.broadcast %cst_37 : f32 to vector<1x1x128xf32>
    %150 = arith.select %147, %148, %149 : vector<1x1x128xi1>, vector<1x1x128xf32>
    %151 = arith.addf %145, %150 : vector<1x1x128xf32>
    %c3_i32 = arith.constant 3 : i32
    %152 = vector.broadcast %c3_i32 : i32 to vector<1x1x128xi32>
    %153 = arith.cmpi eq, %134, %152 : vector<1x1x128xi32>
    %cst_38 = arith.constant 0.000000e+00 : f32
    %154 = vector.broadcast %116 : f32 to vector<1x1x128xf32>
    %155 = vector.broadcast %cst_38 : f32 to vector<1x1x128xf32>
    %156 = arith.select %153, %154, %155 : vector<1x1x128xi1>, vector<1x1x128xf32>
    %157 = arith.addf %151, %156 : vector<1x1x128xf32>
    %c4_i32_39 = arith.constant 4 : i32
    %158 = vector.broadcast %c4_i32_39 : i32 to vector<1x1x128xi32>
    %159 = arith.cmpi eq, %134, %158 : vector<1x1x128xi32>
    %cst_40 = arith.constant 0.000000e+00 : f32
    %160 = vector.broadcast %122 : f32 to vector<1x1x128xf32>
    %161 = vector.broadcast %cst_40 : f32 to vector<1x1x128xf32>
    %162 = arith.select %159, %160, %161 : vector<1x1x128xi1>, vector<1x1x128xf32>
    %163 = arith.addf %157, %162 : vector<1x1x128xf32>
    %c0_41 = arith.constant 0 : index
    %c0_42 = arith.constant 0 : index
    %c0_43 = arith.constant 0 : index
    %164 = vector.load %arg3[%c0_41, %c0_42, %c0_43] : memref<1x1x128xf32, #tpu.memory_space<vmem>>, vector<1x1x128xf32>
    tpu.vector_store %arg3[%c0_41, %c0_42, %c0_43], %163 {strides = array<i32>} : memref<1x1x128xf32, #tpu.memory_space<vmem>>, vector<1x1x128xf32>,
    return
  }
  func.func @transform_0(%arg0: i32) -> (i32, i32, i32) {
    %c0_i32 = arith.constant 0 : i32
    %c0_i32_0 = arith.constant 0 : i32
    %c0_i32_1 = arith.constant 0 : i32
    return %arg0, %c0_i32, %c0_i32_0 : i32, i32, i32
  }
  func.func @transform_1(%arg0: i32) -> (i32, i32, i32) {
    %c0_i32 = arith.constant 0 : i32
    %c0_i32_0 = arith.constant 0 : i32
    %c0_i32_1 = arith.constant 0 : i32
    return %arg0, %c0_i32, %c0_i32_0 : i32, i32, i32
  }
  func.func @transform_2(%arg0: i32) -> (i32, i32, i32) {
    %c0_i32 = arith.constant 0 : i32
    %c0_i32_0 = arith.constant 0 : i32
    %c0_i32_1 = arith.constant 0 : i32
    return %arg0, %c0_i32, %c0_i32_0 : i32, i32, i32
  }
}

</mosaic_0001>

<llo_original>
// kernel: _multibox_loss_pallas.1
$region0: #{_multibox_loss_pallas.1}
  #allocation0 [shape = 'u32[]', space=smem, size = 0x4, offset = 0x4, fixed_abs, tag = 'smem constant byte address 0x4 - core index']
  #allocation1 [shape = 'u32[144,128]{1,0:T(1,128)}', space=vmem, size = 0x12000, scoped, tag = 'internal scratch']
  #allocation2 [shape = 'f32[256,1]{1,0:T(8,128)}', space=vmem, size = 0x20000, scoped, tag = 'scratch operand']
  %s0 = inlined_call_operand.vmem [shape: f32[2,16,256], index: 0, kind: input, shape index: {}]
  %s1 = inlined_call_operand.vmem [shape: f32[2,16,256], index: 1, kind: input, shape index: {}]
  %s2 = inlined_call_operand.vmem [shape: f32[2,1,128], index: 2, kind: output, shape index: {}]
  %s3 = sld [smem:[#allocation0]]
  $region41: #{_multibox_loss_pallas.1} parent=0
    _
  %s5 = ssub.s32 1, %s3
  %s6 = scalar_select 0, %s5, %s3
  loop: start=0, step=1, limit=4
  $region2: #{_multibox_loss_pallas.1} parent=0 // loop_pre_header
    _
  $region3: #{_multibox_loss_pallas.1} parent=0 // loop_header
    %s8 = sphi 0, %s12
    %p9 = scmp.ge.s32.totalorder %s8, 4
    %s18 = sphi 0, %s20
    %s21 = sphi 0, %s18
    %s22 = sphi 0, %s21
    %s38 = sphi 0, %s22
    %s44 = sphi 0, %s46
    %s47 = sphi 0, %s44
    %s48 = sphi 0, %s47
    %s64 = sphi 0, %s48
    %s70 = sphi 0, %s72
    %s73 = sphi 0, %s70
    %s74 = sphi 0, %s73
    %s90 = sphi 0, %s74
  $region4: #{_multibox_loss_pallas.1} parent=0 // loop_header_branch
    %11 = sbr.rel (%p9) target = $region8
  $region5: #{_multibox_loss_pallas.1} parent=0 // loop_body
    %s13 = ssub.s32 %s8, 1
    %s14 = ssub.s32 %s8, 2
    %s15 = sadd.s32 %s8, 1
    %s16 = ssub.s32 %s8, %s15
    %p17 = scmp.eq.s32.totalorder %s16, 0
    %s19 = sadd.s32 %s18, 1
    %s20 = scalar_select %p17, %s18, %s19
    %p23 = pneg %p17
    %p24 = scmp.eq.s32.totalorder %s8, 1
    %p25 = por %p23, %p24
    %p26 = scmp.ne.s32.totalorder %s18, %s21
    %p27 = scmp.eq.s32.totalorder %s8, 0
    %p28 = por %p26, %p27
    %p29 = scmp.ne.s32.totalorder %s18, %s21
    %p30 = scmp.eq.s32.totalorder %s13, 1
    %p31 = por %p29, %p30
    %p32 = scmp.ne.s32.totalorder %s21, %s22
    %p33 = scmp.eq.s32.totalorder %s13, 0
    %p34 = por %p32, %p33
    %p35 = scmp.ne.s32.totalorder %s21, %s22
    %p36 = scmp.eq.s32.totalorder %s14, 1
    %p37 = por %p35, %p36
    %p39 = scmp.ne.s32.totalorder %s22, %s38
    %p40 = scmp.eq.s32.totalorder %s14, 0
    %p41 = por %p39, %p40
    %s42 = ssub.s32 %s8, %s15
    %p43 = scmp.eq.s32.totalorder %s42, 0
    %s45 = sadd.s32 %s44, 1
    %s46 = scalar_select %p43, %s44, %s45
    %p49 = pneg %p43
    %p50 = scmp.eq.s32.totalorder %s8, 1
    %p51 = por %p49, %p50
    %p52 = scmp.ne.s32.totalorder %s44, %s47
    %p53 = scmp.eq.s32.totalorder %s8, 0
    %p54 = por %p52, %p53
    %p55 = scmp.ne.s32.totalorder %s44, %s47
    %p56 = scmp.eq.s32.totalorder %s13, 1
    %p57 = por %p55, %p56
    %p58 = scmp.ne.s32.totalorder %s47, %s48
    %p59 = scmp.eq.s32.totalorder %s13, 0
    %p60 = por %p58, %p59
    %p61 = scmp.ne.s32.totalorder %s47, %s48
    %p62 = scmp.eq.s32.totalorder %s14, 1
    %p63 = por %p61, %p62
    %p65 = scmp.ne.s32.totalorder %s48, %s64
    %p66 = scmp.eq.s32.totalorder %s14, 0
    %p67 = por %p65, %p66
    %s68 = ssub.s32 %s8, %s15
    %p69 = scmp.eq.s32.totalorder %s68, 0
    %s71 = sadd.s32 %s70, 1
    %s72 = scalar_select %p69, %s70, %s71
    %p75 = pneg %p69
    %p76 = scmp.eq.s32.totalorder %s8, 1
    %p77 = por %p75, %p76
    %p78 = scmp.ne.s32.totalorder %s70, %s73
    %p79 = scmp.eq.s32.totalorder %s8, 0
    %p80 = por %p78, %p79
    %p81 = scmp.ne.s32.totalorder %s70, %s73
    %p82 = scmp.eq.s32.totalorder %s13, 1
    %p83 = por %p81, %p82
    %p84 = scmp.ne.s32.totalorder %s73, %s74
    %p85 = scmp.eq.s32.totalorder %s13, 0
    %p86 = por %p84, %p85
    %p87 = scmp.ne.s32.totalorder %s73, %s74
    %p88 = scmp.eq.s32.totalorder %s14, 1
    %p89 = por %p87, %p88
    %p91 = scmp.ne.s32.totalorder %s74, %s90
    %p92 = scmp.eq.s32.totalorder %s14, 0
    %p93 = por %p91, %p92
    %p94 = scmp.le.s32.totalorder 1, %s8
    %p95 = scmp.lt.s32.totalorder %s8, 3
    %p96 = pnand %p94, %p95
    %p97 = pneg %p96
    // Predicated region
    $region9: #{_multibox_loss_pallas.1} parent=5 // pred_check
      _
    $region10: #{_multibox_loss_pallas.1} parent=5 // pred_check_branch
      %99 = sbr.rel (%p96) target = $region12
    $region11: #{_multibox_loss_pallas.1} parent=5 // pred_region
      %s100 = ssub.s32 %s8, 1
    $region12: #{_multibox_loss_pallas.1} parent=5 // pred_fallthru
      _
    %p101 = scmp.lt.s32.totalorder %s8, 2
    // Predicated region
    $region13: #{_multibox_loss_pallas.1} parent=5 // pred_check
      %p102 = pneg %p101
    $region14: #{_multibox_loss_pallas.1} parent=5 // pred_check_branch
      %104 = sbr.rel (%p102) target = $region16
    $region15: #{_multibox_loss_pallas.1} parent=5 // pred_region
      // Predicated region
      $region17: #{_multibox_loss_pallas.1} parent=15 // pred_check
        %p105 = pneg %p28
      $region18: #{_multibox_loss_pallas.1} parent=15 // pred_check_branch
        %107 = sbr.rel (%p105) target = $region20
      $region19: #{_multibox_loss_pallas.1} parent=15 // pred_region
        %p108 = scmp.lt.s32.totalorder %s8, 1
        %s109 = scalar_select %p108, %s8, 1
        %s110 = smul.addr %s109, 4
        %s111 = smul.addr %s110, 8
        %s112 = scalar_lea.vmem %s0, %s111
      $region20: #{_multibox_loss_pallas.1} parent=15 // pred_fallthru
        _
      // Predicated region
      $region21: #{_multibox_loss_pallas.1} parent=15 // pred_check
        %p113 = pneg %p54
      $region22: #{_multibox_loss_pallas.1} parent=15 // pred_check_branch
        %115 = sbr.rel (%p113) target = $region24
      $region23: #{_multibox_loss_pallas.1} parent=15 // pred_region
        %p116 = scmp.lt.s32.totalorder %s8, 1
        %s117 = scalar_select %p116, %s8, 1
        %s118 = smul.addr %s117, 4
        %s119 = smul.addr %s118, 8
        %s120 = scalar_lea.vmem %s1, %s119
      $region24: #{_multibox_loss_pallas.1} parent=15 // pred_fallthru
        _
    $region16: #{_multibox_loss_pallas.1} parent=5 // pred_fallthru
      _
    %p121 = scmp.le.s32.totalorder 1, %s8
    %p122 = scmp.lt.s32.totalorder %s8, 3
    %p123 = pnand %p121, %p122
    %p124 = pneg %p123
    // Predicated region
    $region25: #{_multibox_loss_pallas.1} parent=5 // pred_check
      _
    $region26: #{_multibox_loss_pallas.1} parent=5 // pred_check_branch
      %126 = sbr.rel (%p123) target = $region28
    $region27: #{_multibox_loss_pallas.1} parent=5 // pred_region
      %s127 = ssub.s32 %s8, 1
      %p128 = scmp.lt.s32.totalorder %s13, 1
      %s129 = scalar_select %p128, %s13, 1
      %s130 = smul.addr %s129, 4
      %s131 = smul.addr %s130, 8
      %s132 = scalar_lea.vmem %s0, %s131
      %p133 = pneg %p34
      %p134 = pneg %p31
      %p135 = scmp.lt.s32.totalorder %s13, 1
      %s136 = scalar_select %p135, %s13, 1
      %s137 = smul.addr %s136, 4
      %s138 = smul.addr %s137, 8
      %s139 = scalar_lea.vmem %s1, %s138
      %p140 = pneg %p60
      %p141 = pneg %p57
      %p142 = pneg %p86
      %p143 = pneg %p83
      %p144 = scmp.lt.s32.totalorder %s13, 1
      %s145 = scalar_select %p144, %s13, 1
      %s146 = scalar_lea.vmem %s2, %s145
      %p147 = scmp.lt.s32.totalorder %s13, 1
      %s148 = scalar_select %p147, %s13, 1
      %s149 = smul.addr %s148, 4
      %s150 = smul.addr %s149, 8
      %s151 = scalar_lea.vmem %s0, %s150
      %p152 = scmp.lt.s32.totalorder %s13, 1
      %s153 = scalar_select %p152, %s13, 1
      %s154 = smul.addr %s153, 4
      %s155 = smul.addr %s154, 8
      %s156 = scalar_lea.vmem %s1, %s155
      %p157 = scmp.lt.s32.totalorder %s13, 1
      %s158 = scalar_select %p157, %s13, 1
      %s159 = scalar_lea.vmem %s2, %s158
      %v162 = vld [vmem:[%s151] sm:$0xff]
      %v163 = vld [vmem:[%s151 + $0x8] sm:$0xff]
      %v164 = vld [vmem:[%s151 + $0x10] sm:$0xff]
      %v165 = vld [vmem:[%s151 + $0x18] sm:$0xff]
      %v166 = vld [vmem:[%s156] sm:$0xff]
      %v167 = vld [vmem:[%s156 + $0x8] sm:$0xff]
      %v168 = vld [vmem:[%s156 + $0x10] sm:$0xff]
      %v169 = vld [vmem:[%s156 + $0x18] sm:$0xff]
      %vm170 = vcmp.ne.f32.partialorder %v168, 0.0
      %vm171 = vcmp.ne.f32.partialorder %v169, 0.0
      %vm172 = vcmp.gt.f32.partialorder %v168, 0.0
      %vm173 = vcmp.gt.f32.partialorder %v169, 0.0
      %v174 = vsub.f32 %v162, %v166
      %v175 = vsub.f32 %v163, %v167
      %v176 = vsub.f32 %v164, %v168
      %v177 = vsub.f32 %v165, %v169
      %v178 = vand.u32 2147483647, %v174
      %v179 = vand.u32 2147483647, %v175
      %v180 = vand.u32 2147483647, %v176
      %v181 = vand.u32 2147483647, %v177
      %vm182 = vcmp.lt.f32.partialorder %v178, 1.0
      %vm183 = vcmp.lt.f32.partialorder %v179, 1.0
      %vm184 = vcmp.lt.f32.partialorder %v180, 1.0
      %vm185 = vcmp.lt.f32.partialorder %v181, 1.0
      %v186 = vmul.f32 %v174, 0.5
      %v187 = vmul.f32 %v175, 0.5
      %v188 = vmul.f32 %v176, 0.5
      %v189 = vmul.f32 %v177, 0.5
      %v190 = vmul.f32 %v186, %v174
      %v191 = vmul.f32 %v187, %v175
      %v192 = vmul.f32 %v188, %v176
      %v193 = vmul.f32 %v189, %v177
      %v194 = vsub.f32 %v178, 0.5
      %v195 = vsub.f32 %v179, 0.5
      %v196 = vsub.f32 %v180, 0.5
      %v197 = vsub.f32 %v181, 0.5
      %v198 = vsel %vm182, %v190, %v194
      %v199 = vsel %vm183, %v191, %v195
      %v200 = vsel %vm184, %v192, %v196
      %v201 = vsel %vm185, %v193, %v197
      %v202 = vlaneseq
      %v203 = vshrl.u32 %v202, 7
      %v204 = vadd.s32 %v203, 8
      %vm205 = vcmp.lt.s32.totalorder %v203, 4
      %vm206 = vcmp.lt.s32.totalorder %v204, 4
      %v207 = vsel %vm170, 1, 0
      %v208 = vsel %vm171, 1, 0
      %v209 = vlaneseq
      %v210 = vshrl.u32 %v209, 7
      %v211 = vsub.s32 6, %v210
      %v212 = vrot.slane %v207, %v211
      %v213 = vlaneseq
      %v214 = vshrl.u32 %v213, 7
      %v215 = vsub.s32 6, %v214
      %v216 = vrot.slane %v208, %v215
      %vm217 = vcmp.eq.s32.totalorder %v212, 1
      %vm218 = vcmp.eq.s32.totalorder %v216, 1
      %vm219 = vmand %vm205, %vm217
      %vm220 = vmand %vm205, %vm218
      %vm221 = vmand %vm206, %vm217
      %vm222 = vmand %vm206, %vm218
      %v223 = vsel %vm219, %v198, 0.0
      %v224 = vsel %vm220, %v199, 0.0
      %v225 = vsel %vm221, %v200, 0.0
      %v226 = vsel %vm222, %v201, 0.0
      %v227 = vadd.f32 %v223, %v224
      %v228 = vadd.f32 %v227, %v225
      %v229 = vadd.f32 %v228, %v226
      %230 = vadd.xlane.f32.xlu0 %v229
      %v231 = vpop.xlane.xlu0 %230
      %v232 = vrot.slane %v231, 4
      %v233 = vadd.f32 %v231, %v232
      %v234 = vrot.slane %v233, 2
      %v235 = vadd.f32 %v233, %v234
      %v236 = vrot.slane %v235, 1
      %v237 = vadd.f32 %v235, %v236
      %s238 = vtos %v237
      %vm239 = vcmp.ge.s32.totalorder %v203, 4
      %vm240 = vcmp.ge.s32.totalorder %v204, 4
      %vm241 = vcmp.lt.s32.totalorder %v203, 14
      %vm242 = vcmp.lt.s32.totalorder %v204, 14
      %vm243 = vmand %vm239, %vm241
      %vm244 = vmand %vm240, %vm242
      %v245 = vsel %vm172, 1, 0
      %v246 = vsel %vm173, 1, 0
      %v247 = vlaneseq
      %v248 = vshrl.u32 %v247, 7
      %v249 = vsub.s32 6, %v248
      %v250 = vrot.slane %v245, %v249
      %v251 = vlaneseq
      %v252 = vshrl.u32 %v251, 7
      %v253 = vsub.s32 6, %v252
      %v254 = vrot.slane %v246, %v253
      %vm255 = vcmp.eq.s32.totalorder %v250, 1
      %vm256 = vcmp.eq.s32.totalorder %v254, 1
      %vm257 = vmand %vm243, %vm255
      %vm258 = vmand %vm243, %vm256
      %vm259 = vmand %vm244, %vm255
      %vm260 = vmand %vm244, %vm256
      %v261 = vsel %vm257, %v198, 0.0
      %v262 = vsel %vm258, %v199, 0.0
      %v263 = vsel %vm259, %v200, 0.0
      %v264 = vsel %vm260, %v201, 0.0
      %v265 = vadd.f32 %v261, %v262
      %v266 = vadd.f32 %v265, %v263
      %v267 = vadd.f32 %v266, %v264
      %268 = vadd.xlane.f32.xlu0 %v267
      %v269 = vpop.xlane.xlu0 %268
      %v270 = vrot.slane %v269, 4
      %v271 = vadd.f32 %v269, %v270
      %v272 = vrot.slane %v271, 2
      %v273 = vadd.f32 %v271, %v272
      %v274 = vrot.slane %v273, 1
      %v275 = vadd.f32 %v273, %v274
      %s276 = vtos %v275
      %vm277 = vcmask 1047558
      %v278 = vsel %vm277, %v164, -inf
      %v279 = vrot.slane %v278, 4
      %v280 = vmax.f32 %v278, %v279
      %v281 = vrot.slane %v280, 2
      %v282 = vmax.f32 %v280, %v281
      %v283 = vrot.slane %v282, 1
      %v284 = vmax.f32 %v282, %v283
      %v285 = vsel %vm277, %v165, -inf
      %v286 = vrot.slane %v285, 4
      %v287 = vmax.f32 %v285, %v286
      %v288 = vrot.slane %v287, 2
      %v289 = vmax.f32 %v287, %v288
      %v290 = vrot.slane %v289, 1
      %v291 = vmax.f32 %v289, %v290
      %v292 = vsub.f32 %v164, %v284
      %v293 = vsub.f32 %v165, %v291
      %v294 = vmul.f32 %v292, 1.442695
      %v295 = vpow.pop %v294
      %v296 = vmul.f32 %v293, 1.442695
      %v297 = vpow.pop %v296
      %v300 = vrot.slane %v295, 6
      %v301 = vrot.slane %v297, 6
      %vm304 = vcmask 1041408
      %v305 = vsel %vm304, %v300, 0.0
      %v306 = vrot.slane %v305, 4
      %v307 = vadd.f32 %v305, %v306
      %v308 = vrot.slane %v307, 2
      %v309 = vadd.f32 %v307, %v308
      %v310 = vrot.slane %v309, 1
      %v311 = vadd.f32 %v309, %v310
      %v312 = vsel %vm304, %v301, 0.0
      %v313 = vrot.slane %v312, 4
      %v314 = vadd.f32 %v312, %v313
      %v315 = vrot.slane %v314, 2
      %v316 = vadd.f32 %v314, %v315
      %v317 = vrot.slane %v316, 1
      %v318 = vadd.f32 %v316, %v317
      %v319 = vlog2.pop %v311
      %v320 = vmul.f32 %v319, 0.6931472
      %v321 = vlog2.pop %v318
      %v322 = vmul.f32 %v321, 0.6931472
      %v323 = vadd.f32 %v320, %v284
      %v324 = vadd.f32 %v322, %v291
      %v327 = vrot.slane %v164, 1
      %v328 = vrot.slane %v165, 1
      %v331 = vsel %vm170, %v327, %v164
      %v332 = vsel %vm171, %v328, %v165
      %v333 = vsub.f32 %v323, %v331
      %v334 = vsub.f32 %v324, %v332
      %v335 = vsel %vm170, 0.0, %v333
      %v336 = vsel %vm171, 0.0, %v334
      %v337 = vlaneseq
      %v338 = vshrl.u32 %v337, 7
      %v339 = vsub.s32 6, %v338
      %v340 = vrot.slane %v335, %v339
      %342 = vbcast.lane.b32.xlu0 %v340, 256
      %v343 = vpop.permute.xlu0 %342
      %s345 = sor.u32 256, 8
      %346 = vbcast.lane.b32.xlu0 %v340, %s345
      %v347 = vpop.permute.xlu0 %346
      %s349 = sor.u32 256, 16
      %350 = vbcast.lane.b32.xlu0 %v340, %s349
      %v351 = vpop.permute.xlu0 %350
      %s353 = sor.u32 256, 24
      %354 = vbcast.lane.b32.xlu0 %v340, %s353
      %v355 = vpop.permute.xlu0 %354
      %s357 = sor.u32 256, 32
      %358 = vbcast.lane.b32.xlu0 %v340, %s357
      %v359 = vpop.permute.xlu0 %358
      %s361 = sor.u32 256, 40
      %362 = vbcast.lane.b32.xlu0 %v340, %s361
      %v363 = vpop.permute.xlu0 %362
      %s365 = sor.u32 256, 48
      %366 = vbcast.lane.b32.xlu0 %v340, %s365
      %v367 = vpop.permute.xlu0 %366
      %s369 = sor.u32 256, 56
      %370 = vbcast.lane.b32.xlu0 %v340, %s369
      %v371 = vpop.permute.xlu0 %370
      %s373 = sor.u32 256, 64
      %374 = vbcast.lane.b32.xlu0 %v340, %s373
      %v375 = vpop.permute.xlu0 %374
      %s377 = sor.u32 256, 72
      %378 = vbcast.lane.b32.xlu0 %v340, %s377
      %v379 = vpop.permute.xlu0 %378
      %s381 = sor.u32 256, 80
      %382 = vbcast.lane.b32.xlu0 %v340, %s381
      %v383 = vpop.permute.xlu0 %382
      %s385 = sor.u32 256, 88
      %386 = vbcast.lane.b32.xlu0 %v340, %s385
      %v387 = vpop.permute.xlu0 %386
      %s389 = sor.u32 256, 96
      %390 = vbcast.lane.b32.xlu0 %v340, %s389
      %v391 = vpop.permute.xlu0 %390
      %s393 = sor.u32 256, 104
      %394 = vbcast.lane.b32.xlu0 %v340, %s393
      %v395 = vpop.permute.xlu0 %394
      %s397 = sor.u32 256, 112
      %398 = vbcast.lane.b32.xlu0 %v340, %s397
      %v399 = vpop.permute.xlu0 %398
      %s401 = sor.u32 256, 120
      %402 = vbcast.lane.b32.xlu0 %v340, %s401
      %v403 = vpop.permute.xlu0 %402
      %v404 = vlaneseq
      %v405 = vshrl.u32 %v404, 7
      %v406 = vsub.s32 6, %v405
      %v407 = vrot.slane %v336, %v406
      %409 = vbcast.lane.b32.xlu0 %v407, 256
      %v410 = vpop.permute.xlu0 %409
      %s412 = sor.u32 256, 8
      %413 = vbcast.lane.b32.xlu0 %v407, %s412
      %v414 = vpop.permute.xlu0 %413
      %s416 = sor.u32 256, 16
      %417 = vbcast.lane.b32.xlu0 %v407, %s416
      %v418 = vpop.permute.xlu0 %417
      %s420 = sor.u32 256, 24
      %421 = vbcast.lane.b32.xlu0 %v407, %s420
      %v422 = vpop.permute.xlu0 %421
      %s424 = sor.u32 256, 32
      %425 = vbcast.lane.b32.xlu0 %v407, %s424
      %v426 = vpop.permute.xlu0 %425
      %s428 = sor.u32 256, 40
      %429 = vbcast.lane.b32.xlu0 %v407, %s428
      %v430 = vpop.permute.xlu0 %429
      %s432 = sor.u32 256, 48
      %433 = vbcast.lane.b32.xlu0 %v407, %s432
      %v434 = vpop.permute.xlu0 %433
      %s436 = sor.u32 256, 56
      %437 = vbcast.lane.b32.xlu0 %v407, %s436
      %v438 = vpop.permute.xlu0 %437
      %s440 = sor.u32 256, 64
      %441 = vbcast.lane.b32.xlu0 %v407, %s440
      %v442 = vpop.permute.xlu0 %441
      %s444 = sor.u32 256, 72
      %445 = vbcast.lane.b32.xlu0 %v407, %s444
      %v446 = vpop.permute.xlu0 %445
      %s448 = sor.u32 256, 80
      %449 = vbcast.lane.b32.xlu0 %v407, %s448
      %v450 = vpop.permute.xlu0 %449
      %s452 = sor.u32 256, 88
      %453 = vbcast.lane.b32.xlu0 %v407, %s452
      %v454 = vpop.permute.xlu0 %453
      %s456 = sor.u32 256, 96
      %457 = vbcast.lane.b32.xlu0 %v407, %s456
      %v458 = vpop.permute.xlu0 %457
      %s460 = sor.u32 256, 104
      %461 = vbcast.lane.b32.xlu0 %v407, %s460
      %v462 = vpop.permute.xlu0 %461
      %s464 = sor.u32 256, 112
      %465 = vbcast.lane.b32.xlu0 %v407, %s464
      %v466 = vpop.permute.xlu0 %465
      %s468 = sor.u32 256, 120
      %469 = vbcast.lane.b32.xlu0 %v407, %s468
      %v470 = vpop.permute.xlu0 %469
      %vm471 = vcmask 7168
      %472 = vst.msk [vmem:[#allocation2] sm:$0xff] %vm471, %v343
      %473 = vst.msk [vmem:[#allocation2 + $0x8] sm:$0xff] %vm471, %v347
      %474 = vst.msk [vmem:[#allocation2 + $0x10] sm:$0xff] %vm471, %v351
      %475 = vst.msk [vmem:[#allocation2 + $0x18] sm:$0xff] %vm471, %v355
      %476 = vst.msk [vmem:[#allocation2 + $0x20] sm:$0xff] %vm471, %v359
      %477 = vst.msk [vmem:[#allocation2 + $0x28] sm:$0xff] %vm471, %v363
      %478 = vst.msk [vmem:[#allocation2 + $0x30] sm:$0xff] %vm471, %v367
      %479 = vst.msk [vmem:[#allocation2 + $0x38] sm:$0xff] %vm471, %v371
      %480 = vst.msk [vmem:[#allocation2 + $0x40] sm:$0xff] %vm471, %v375
      %481 = vst.msk [vmem:[#allocation2 + $0x48] sm:$0xff] %vm471, %v379
      %482 = vst.msk [vmem:[#allocation2 + $0x50] sm:$0xff] %vm471, %v383
      %483 = vst.msk [vmem:[#allocation2 + $0x58] sm:$0xff] %vm471, %v387
      %484 = vst.msk [vmem:[#allocation2 + $0x60] sm:$0xff] %vm471, %v391
      %485 = vst.msk [vmem:[#allocation2 + $0x68] sm:$0xff] %vm471, %v395
      %486 = vst.msk [vmem:[#allocation2 + $0x70] sm:$0xff] %vm471, %v399
      %487 = vst.msk [vmem:[#allocation2 + $0x78] sm:$0xff] %vm471, %v403
      %488 = vst.msk [vmem:[#allocation2 + $0x80] sm:$0xff] %vm471, %v410
      %489 = vst.msk [vmem:[#allocation2 + $0x88] sm:$0xff] %vm471, %v414
      %490 = vst.msk [vmem:[#allocation2 + $0x90] sm:$0xff] %vm471, %v418
      %491 = vst.msk [vmem:[#allocation2 + $0x98] sm:$0xff] %vm471, %v422
      %492 = vst.msk [vmem:[#allocation2 + $0xa0] sm:$0xff] %vm471, %v426
      %493 = vst.msk [vmem:[#allocation2 + $0xa8] sm:$0xff] %vm471, %v430
      %494 = vst.msk [vmem:[#allocation2 + $0xb0] sm:$0xff] %vm471, %v434
      %495 = vst.msk [vmem:[#allocation2 + $0xb8] sm:$0xff] %vm471, %v438
      %496 = vst.msk [vmem:[#allocation2 + $0xc0] sm:$0xff] %vm471, %v442
      %497 = vst.msk [vmem:[#allocation2 + $0xc8] sm:$0xff] %vm471, %v446
      %498 = vst.msk [vmem:[#allocation2 + $0xd0] sm:$0xff] %vm471, %v450
      %499 = vst.msk [vmem:[#allocation2 + $0xd8] sm:$0xff] %vm471, %v454
      %500 = vst.msk [vmem:[#allocation2 + $0xe0] sm:$0xff] %vm471, %v458
      %501 = vst.msk [vmem:[#allocation2 + $0xe8] sm:$0xff] %vm471, %v462
      %502 = vst.msk [vmem:[#allocation2 + $0xf0] sm:$0xff] %vm471, %v466
      %503 = vst.msk [vmem:[#allocation2 + $0xf8] sm:$0xff] %vm471, %v470
      %v504 = vlaneseq
      %v505 = vand.u32 %v504, 127
      %v506 = vadd.s32 %v505, 128
      %v507 = vadd.s32 %v203, 16
      %v508 = vadd.s32 %v203, 24
      %v509 = vadd.s32 %v203, 32
      %v510 = vadd.s32 %v203, 40
      %v511 = vadd.s32 %v203, 48
      %v512 = vadd.s32 %v203, 56
      %v513 = vadd.s32 %v203, 64
      %v514 = vadd.s32 %v203, 72
      %v515 = vadd.s32 %v203, 80
      %v516 = vadd.s32 %v203, 88
      %v517 = vadd.s32 %v203, 96
      %v518 = vadd.s32 %v203, 104
      %v519 = vadd.s32 %v203, 112
      %v520 = vadd.s32 %v203, 120
      %v521 = vld [vmem:[#allocation2] sm:$0xff]
      %v522 = vld [vmem:[#allocation2 + $0x8] sm:$0xff]
      %v523 = vld [vmem:[#allocation2 + $0x10] sm:$0xff]
      %v524 = vld [vmem:[#allocation2 + $0x18] sm:$0xff]
      %v525 = vld [vmem:[#allocation2 + $0x20] sm:$0xff]
      %v526 = vld [vmem:[#allocation2 + $0x28] sm:$0xff]
      %v527 = vld [vmem:[#allocation2 + $0x30] sm:$0xff]
      %v528 = vld [vmem:[#allocation2 + $0x38] sm:$0xff]
      %v529 = vld [vmem:[#allocation2 + $0x40] sm:$0xff]
      %v530 = vld [vmem:[#allocation2 + $0x48] sm:$0xff]
      %v531 = vld [vmem:[#allocation2 + $0x50] sm:$0xff]
      %v532 = vld [vmem:[#allocation2 + $0x58] sm:$0xff]
      %v533 = vld [vmem:[#allocation2 + $0x60] sm:$0xff]
      %v534 = vld [vmem:[#allocation2 + $0x68] sm:$0xff]
      %v535 = vld [vmem:[#allocation2 + $0x70] sm:$0xff]
      %v536 = vld [vmem:[#allocation2 + $0x78] sm:$0xff]
      %v537 = vstv 0
      %v538 = vadd.s32 %v203, %v537
      %v539 = vadd.s32 %v204, %v537
      %v540 = vadd.s32 %v507, %v537
      %v541 = vadd.s32 %v508, %v537
      %v542 = vadd.s32 %v509, %v537
      %v543 = vadd.s32 %v510, %v537
      %v544 = vadd.s32 %v511, %v537
      %v545 = vadd.s32 %v512, %v537
      %v546 = vadd.s32 %v513, %v537
      %v547 = vadd.s32 %v514, %v537
      %v548 = vadd.s32 %v515, %v537
      %v549 = vadd.s32 %v516, %v537
      %v550 = vadd.s32 %v517, %v537
      %v551 = vadd.s32 %v518, %v537
      %v552 = vadd.s32 %v519, %v537
      %v553 = vadd.s32 %v520, %v537
      %555 = vset.pattern.permute.xlu0 0
      %556 = vperm.xlu0 %555, %v521
      %v557 = vpop.permute.xlu0 %556
      %560 = vset.pattern.permute.xlu0 0
      %561 = vperm.xlu0 %560, %v522
      %v562 = vpop.permute.xlu0 %561
      %565 = vset.pattern.permute.xlu0 0
      %566 = vperm.xlu0 %565, %v523
      %v567 = vpop.permute.xlu0 %566
      %570 = vset.pattern.permute.xlu0 0
      %571 = vperm.xlu0 %570, %v524
      %v572 = vpop.permute.xlu0 %571
      %575 = vset.pattern.permute.xlu0 0
      %576 = vperm.xlu0 %575, %v525
      %v577 = vpop.permute.xlu0 %576
      %580 = vset.pattern.permute.xlu0 0
      %581 = vperm.xlu0 %580, %v526
      %v582 = vpop.permute.xlu0 %581
      %585 = vset.pattern.permute.xlu0 0
      %586 = vperm.xlu0 %585, %v527
      %v587 = vpop.permute.xlu0 %586
      %590 = vset.pattern.permute.xlu0 0
      %591 = vperm.xlu0 %590, %v528
      %v592 = vpop.permute.xlu0 %591
      %595 = vset.pattern.permute.xlu0 0
      %596 = vperm.xlu0 %595, %v529
      %v597 = vpop.permute.xlu0 %596
      %600 = vset.pattern.permute.xlu0 0
      %601 = vperm.xlu0 %600, %v530
      %v602 = vpop.permute.xlu0 %601
      %605 = vset.pattern.permute.xlu0 0
      %606 = vperm.xlu0 %605, %v531
      %v607 = vpop.permute.xlu0 %606
      %610 = vset.pattern.permute.xlu0 0
      %611 = vperm.xlu0 %610, %v532
      %v612 = vpop.permute.xlu0 %611
      %615 = vset.pattern.permute.xlu0 0
      %616 = vperm.xlu0 %615, %v533
      %v617 = vpop.permute.xlu0 %616
      %620 = vset.pattern.permute.xlu0 0
      %621 = vperm.xlu0 %620, %v534
      %v622 = vpop.permute.xlu0 %621
      %625 = vset.pattern.permute.xlu0 0
      %626 = vperm.xlu0 %625, %v535
      %v627 = vpop.permute.xlu0 %626
      %630 = vset.pattern.permute.xlu0 0
      %631 = vperm.xlu0 %630, %v536
      %v632 = vpop.permute.xlu0 %631
      %vm634 = vcmp.gt.f32.partialorder %v557, %v340
      %vm635 = vcmp.gt.f32.partialorder %v557, %v407
      %vm636 = vcmp.gt.f32.partialorder %v562, %v340
      %vm637 = vcmp.gt.f32.partialorder %v562, %v407
      %vm638 = vcmp.gt.f32.partialorder %v567, %v340
      %vm639 = vcmp.gt.f32.partialorder %v567, %v407
      %vm640 = vcmp.gt.f32.partialorder %v572, %v340
      %vm641 = vcmp.gt.f32.partialorder %v572, %v407
      %vm642 = vcmp.gt.f32.partialorder %v577, %v340
      %vm643 = vcmp.gt.f32.partialorder %v577, %v407
      %vm644 = vcmp.gt.f32.partialorder %v582, %v340
      %vm645 = vcmp.gt.f32.partialorder %v582, %v407
      %vm646 = vcmp.gt.f32.partialorder %v587, %v340
      %vm647 = vcmp.gt.f32.partialorder %v587, %v407
      %vm648 = vcmp.gt.f32.partialorder %v592, %v340
      %vm649 = vcmp.gt.f32.partialorder %v592, %v407
      %vm650 = vcmp.gt.f32.partialorder %v597, %v340
      %vm651 = vcmp.gt.f32.partialorder %v597, %v407
      %vm652 = vcmp.gt.f32.partialorder %v602, %v340
      %vm653 = vcmp.gt.f32.partialorder %v602, %v407
      %vm654 = vcmp.gt.f32.partialorder %v607, %v340
      %vm655 = vcmp.gt.f32.partialorder %v607, %v407
      %vm656 = vcmp.gt.f32.partialorder %v612, %v340
      %vm657 = vcmp.gt.f32.partialorder %v612, %v407
      %vm658 = vcmp.gt.f32.partialorder %v617, %v340
      %vm659 = vcmp.gt.f32.partialorder %v617, %v407
      %vm660 = vcmp.gt.f32.partialorder %v622, %v340
      %vm661 = vcmp.gt.f32.partialorder %v622, %v407
      %vm662 = vcmp.gt.f32.partialorder %v627, %v340
      %vm663 = vcmp.gt.f32.partialorder %v627, %v407
      %vm664 = vcmp.gt.f32.partialorder %v632, %v340
      %vm665 = vcmp.gt.f32.partialorder %v632, %v407
      %vm666 = vcmp.eq.f32.partialorder %v557, %v340
      %vm667 = vcmp.eq.f32.partialorder %v557, %v407
      %vm668 = vcmp.eq.f32.partialorder %v562, %v340
      %vm669 = vcmp.eq.f32.partialorder %v562, %v407
      %vm670 = vcmp.eq.f32.partialorder %v567, %v340
      %vm671 = vcmp.eq.f32.partialorder %v567, %v407
      %vm672 = vcmp.eq.f32.partialorder %v572, %v340
      %vm673 = vcmp.eq.f32.partialorder %v572, %v407
      %vm674 = vcmp.eq.f32.partialorder %v577, %v340
      %vm675 = vcmp.eq.f32.partialorder %v577, %v407
      %vm676 = vcmp.eq.f32.partialorder %v582, %v340
      %vm677 = vcmp.eq.f32.partialorder %v582, %v407
      %vm678 = vcmp.eq.f32.partialorder %v587, %v340
      %vm679 = vcmp.eq.f32.partialorder %v587, %v407
      %vm680 = vcmp.eq.f32.partialorder %v592, %v340
      %vm681 = vcmp.eq.f32.partialorder %v592, %v407
      %vm682 = vcmp.eq.f32.partialorder %v597, %v340
      %vm683 = vcmp.eq.f32.partialorder %v597, %v407
      %vm684 = vcmp.eq.f32.partialorder %v602, %v340
      %vm685 = vcmp.eq.f32.partialorder %v602, %v407
      %vm686 = vcmp.eq.f32.partialorder %v607, %v340
      %vm687 = vcmp.eq.f32.partialorder %v607, %v407
      %vm688 = vcmp.eq.f32.partialorder %v612, %v340
      %vm689 = vcmp.eq.f32.partialorder %v612, %v407
      %vm690 = vcmp.eq.f32.partialorder %v617, %v340
      %vm691 = vcmp.eq.f32.partialorder %v617, %v407
      %vm692 = vcmp.eq.f32.partialorder %v622, %v340
      %vm693 = vcmp.eq.f32.partialorder %v622, %v407
      %vm694 = vcmp.eq.f32.partialorder %v627, %v340
      %vm695 = vcmp.eq.f32.partialorder %v627, %v407
      %vm696 = vcmp.eq.f32.partialorder %v632, %v340
      %vm697 = vcmp.eq.f32.partialorder %v632, %v407
      %vm698 = vcmp.lt.s32.totalorder %v538, %v505
      %vm699 = vcmp.lt.s32.totalorder %v538, %v506
      %vm700 = vcmp.lt.s32.totalorder %v539, %v505
      %vm701 = vcmp.lt.s32.totalorder %v539, %v506
      %vm702 = vcmp.lt.s32.totalorder %v540, %v505
      %vm703 = vcmp.lt.s32.totalorder %v540, %v506
      %vm704 = vcmp.lt.s32.totalorder %v541, %v505
      %vm705 = vcmp.lt.s32.totalorder %v541, %v506
      %vm706 = vcmp.lt.s32.totalorder %v542, %v505
      %vm707 = vcmp.lt.s32.totalorder %v542, %v506
      %vm708 = vcmp.lt.s32.totalorder %v543, %v505
      %vm709 = vcmp.lt.s32.totalorder %v543, %v506
      %vm710 = vcmp.lt.s32.totalorder %v544, %v505
      %vm711 = vcmp.lt.s32.totalorder %v544, %v506
      %vm712 = vcmp.lt.s32.totalorder %v545, %v505
      %vm713 = vcmp.lt.s32.totalorder %v545, %v506
      %vm714 = vcmp.lt.s32.totalorder %v546, %v505
      %vm715 = vcmp.lt.s32.totalorder %v546, %v506
      %vm716 = vcmp.lt.s32.totalorder %v547, %v505
      %vm717 = vcmp.lt.s32.totalorder %v547, %v506
      %vm718 = vcmp.lt.s32.totalorder %v548, %v505
      %vm719 = vcmp.lt.s32.totalorder %v548, %v506
      %vm720 = vcmp.lt.s32.totalorder %v549, %v505
      %vm721 = vcmp.lt.s32.totalorder %v549, %v506
      %vm722 = vcmp.lt.s32.totalorder %v550, %v505
      %vm723 = vcmp.lt.s32.totalorder %v550, %v506
      %vm724 = vcmp.lt.s32.totalorder %v551, %v505
      %vm725 = vcmp.lt.s32.totalorder %v551, %v506
      %vm726 = vcmp.lt.s32.totalorder %v552, %v505
      %vm727 = vcmp.lt.s32.totalorder %v552, %v506
      %vm728 = vcmp.lt.s32.totalorder %v553, %v505
      %vm729 = vcmp.lt.s32.totalorder %v553, %v506
      %vm730 = vmand %vm666, %vm698
      %vm731 = vmand %vm667, %vm699
      %vm732 = vmand %vm668, %vm700
      %vm733 = vmand %vm669, %vm701
      %vm734 = vmand %vm670, %vm702
      %vm735 = vmand %vm671, %vm703
      %vm736 = vmand %vm672, %vm704
      %vm737 = vmand %vm673, %vm705
      %vm738 = vmand %vm674, %vm706
      %vm739 = vmand %vm675, %vm707
      %vm740 = vmand %vm676, %vm708
      %vm741 = vmand %vm677, %vm709
      %vm742 = vmand %vm678, %vm710
      %vm743 = vmand %vm679, %vm711
      %vm744 = vmand %vm680, %vm712
      %vm745 = vmand %vm681, %vm713
      %vm746 = vmand %vm682, %vm714
      %vm747 = vmand %vm683, %vm715
      %vm748 = vmand %vm684, %vm716
      %vm749 = vmand %vm685, %vm717
      %vm750 = vmand %vm686, %vm718
      %vm751 = vmand %vm687, %vm719
      %vm752 = vmand %vm688, %vm720
      %vm753 = vmand %vm689, %vm721
      %vm754 = vmand %vm690, %vm722
      %vm755 = vmand %vm691, %vm723
      %vm756 = vmand %vm692, %vm724
      %vm757 = vmand %vm693, %vm725
      %vm758 = vmand %vm694, %vm726
      %vm759 = vmand %vm695, %vm727
      %vm760 = vmand %vm696, %vm728
      %vm761 = vmand %vm697, %vm729
      %vm762 = vmor %vm634, %vm730
      %vm763 = vmor %vm635, %vm731
      %vm764 = vmor %vm636, %vm732
      %vm765 = vmor %vm637, %vm733
      %vm766 = vmor %vm638, %vm734
      %vm767 = vmor %vm639, %vm735
      %vm768 = vmor %vm640, %vm736
      %vm769 = vmor %vm641, %vm737
      %vm770 = vmor %vm642, %vm738
      %vm771 = vmor %vm643, %vm739
      %vm772 = vmor %vm644, %vm740
      %vm773 = vmor %vm645, %vm741
      %vm774 = vmor %vm646, %vm742
      %vm775 = vmor %vm647, %vm743
      %vm776 = vmor %vm648, %vm744
      %vm777 = vmor %vm649, %vm745
      %vm778 = vmor %vm650, %vm746
      %vm779 = vmor %vm651, %vm747
      %vm780 = vmor %vm652, %vm748
      %vm781 = vmor %vm653, %vm749
      %vm782 = vmor %vm654, %vm750
      %vm783 = vmor %vm655, %vm751
      %vm784 = vmor %vm656, %vm752
      %vm785 = vmor %vm657, %vm753
      %vm786 = vmor %vm658, %vm754
      %vm787 = vmor %vm659, %vm755
      %vm788 = vmor %vm660, %vm756
      %vm789 = vmor %vm661, %vm757
      %vm790 = vmor %vm662, %vm758
      %vm791 = vmor %vm663, %vm759
      %vm792 = vmor %vm664, %vm760
      %vm793 = vmor %vm665, %vm761
      %v794 = vsel %vm762, 1, 0
      %v795 = vsel %vm763, 1, 0
      %v796 = vsel %vm764, 1, 0
      %v797 = vsel %vm765, 1, 0
      %v798 = vsel %vm766, 1, 0
      %v799 = vsel %vm767, 1, 0
      %v800 = vsel %vm768, 1, 0
      %v801 = vsel %vm769, 1, 0
      %v802 = vsel %vm770, 1, 0
      %v803 = vsel %vm771, 1, 0
      %v804 = vsel %vm772, 1, 0
      %v805 = vsel %vm773, 1, 0
      %v806 = vsel %vm774, 1, 0
      %v807 = vsel %vm775, 1, 0
      %v808 = vsel %vm776, 1, 0
      %v809 = vsel %vm777, 1, 0
      %v810 = vsel %vm778, 1, 0
      %v811 = vsel %vm779, 1, 0
      %v812 = vsel %vm780, 1, 0
      %v813 = vsel %vm781, 1, 0
      %v814 = vsel %vm782, 1, 0
      %v815 = vsel %vm783, 1, 0
      %v816 = vsel %vm784, 1, 0
      %v817 = vsel %vm785, 1, 0
      %v818 = vsel %vm786, 1, 0
      %v819 = vsel %vm787, 1, 0
      %v820 = vsel %vm788, 1, 0
      %v821 = vsel %vm789, 1, 0
      %v822 = vsel %vm790, 1, 0
      %v823 = vsel %vm791, 1, 0
      %v824 = vsel %vm792, 1, 0
      %v825 = vsel %vm793, 1, 0
      %v826 = vcvt.s32.f32 %v794
      %v827 = vcvt.s32.f32 %v795
      %v828 = vcvt.s32.f32 %v796
      %v829 = vcvt.s32.f32 %v797
      %v830 = vcvt.s32.f32 %v798
      %v831 = vcvt.s32.f32 %v799
      %v832 = vcvt.s32.f32 %v800
      %v833 = vcvt.s32.f32 %v801
      %v834 = vcvt.s32.f32 %v802
      %v835 = vcvt.s32.f32 %v803
      %v836 = vcvt.s32.f32 %v804
      %v837 = vcvt.s32.f32 %v805
      %v838 = vcvt.s32.f32 %v806
      %v839 = vcvt.s32.f32 %v807
      %v840 = vcvt.s32.f32 %v808
      %v841 = vcvt.s32.f32 %v809
      %v842 = vcvt.s32.f32 %v810
      %v843 = vcvt.s32.f32 %v811
      %v844 = vcvt.s32.f32 %v812
      %v845 = vcvt.s32.f32 %v813
      %v846 = vcvt.s32.f32 %v814
      %v847 = vcvt.s32.f32 %v815
      %v848 = vcvt.s32.f32 %v816
      %v849 = vcvt.s32.f32 %v817
      %v850 = vcvt.s32.f32 %v818
      %v851 = vcvt.s32.f32 %v819
      %v852 = vcvt.s32.f32 %v820
      %v853 = vcvt.s32.f32 %v821
      %v854 = vcvt.s32.f32 %v822
      %v855 = vcvt.s32.f32 %v823
      %v856 = vcvt.s32.f32 %v824
      %v857 = vcvt.s32.f32 %v825
      %v858 = vpack.c.bf16 %v828, %v826
      %v859 = vpack.c.bf16 %v829, %v827
      %v860 = vpack.c.bf16 %v832, %v830
      %v861 = vpack.c.bf16 %v833, %v831
      %v862 = vpack.c.bf16 %v836, %v834
      %v863 = vpack.c.bf16 %v837, %v835
      %v864 = vpack.c.bf16 %v840, %v838
      %v865 = vpack.c.bf16 %v841, %v839
      %v866 = vpack.c.bf16 %v844, %v842
      %v867 = vpack.c.bf16 %v845, %v843
      %v868 = vpack.c.bf16 %v848, %v846
      %v869 = vpack.c.bf16 %v849, %v847
      %v870 = vpack.c.bf16 %v852, %v850
      %v871 = vpack.c.bf16 %v853, %v851
      %v872 = vpack.c.bf16 %v856, %v854
      %v873 = vpack.c.bf16 %v857, %v855
      %874 = vmatprep.subr.bf16.mxu0 %v859
      %875 = vmatpush1.bf16.msra.mxu0 %v858
      %876 = vmatprep.subr.bf16.mxu0 %v861
      %877 = vmatpush1.bf16.msra.mxu0 %v860
      %878 = vmatprep.subr.bf16.mxu0 %v863
      %879 = vmatpush1.bf16.msra.mxu0 %v862
      %880 = vmatprep.subr.bf16.mxu0 %v865
      %881 = vmatpush1.bf16.msra.mxu0 %v864
      %882 = vmatprep.subr.bf16.mxu0 %v867
      %883 = vmatpush1.bf16.msra.mxu0 %v866
      %884 = vmatprep.subr.bf16.mxu0 %v869
      %885 = vmatpush1.bf16.msra.mxu0 %v868
      %886 = vmatprep.subr.bf16.mxu0 %v871
      %887 = vmatpush1.bf16.msra.mxu0 %v870
      %888 = vmatprep.subr.bf16.mxu0 %v873
      %889 = vmatpush1.bf16.msra.mxu0 %v872
      %890 = vmatprep.subr.bf16.mxu0 0
      %891 = vmatpush1.bf16.msra.mxu0 0
      %892 = vmatprep.subr.bf16.mxu0 0
      %893 = vmatpush1.bf16.msra.mxu0 0
      %894 = vmatprep.subr.bf16.mxu0 0
      %895 = vmatpush1.bf16.msra.mxu0 0
      %896 = vmatprep.subr.bf16.mxu0 0
      %897 = vmatpush1.bf16.msra.mxu0 0
      %898 = vmatprep.subr.bf16.mxu0 0
      %899 = vmatpush1.bf16.msra.mxu0 0
      %900 = vmatprep.subr.bf16.mxu0 0
      %901 = vmatpush1.bf16.msra.mxu0 0
      %902 = vmatprep.subr.bf16.mxu0 0
      %903 = vmatpush1.bf16.msra.mxu0 0
      %904 = vmatprep.subr.bf16.mxu0 0
      %905 = vmatpush1.bf16.msra.mxu0 0
      %906 = vmatprep.mubr.bf16.mxu0 0
      %907 = vmatmul.mubr.bf16.gmra.mrb[0].mxu0 1065369472
      %v908 = vpop.f32.mrb[0].mxu0
      %v909 = vadd.f32 0.0, %v908
      %v910 = vpop.f32.mrb[0].mxu0
      %v911 = vadd.f32 0.0, %v910
      %v912 = vpop.f32.mrb[0].mxu0
      %v913 = vpop.f32.mrb[0].mxu0
      %914 = vdwg.mxu0
      %v915 = vadd.f32 %v909, 0.0
      %v916 = vadd.f32 %v911, 0.0
      %s917 = scalar_lea.vmem [#allocation2], 128
      %v918 = vld [vmem:[%s917] sm:$0xff]
      %v919 = vld [vmem:[%s917 + $0x8] sm:$0xff]
      %v920 = vld [vmem:[%s917 + $0x10] sm:$0xff]
      %v921 = vld [vmem:[%s917 + $0x18] sm:$0xff]
      %v922 = vld [vmem:[%s917 + $0x20] sm:$0xff]
      %v923 = vld [vmem:[%s917 + $0x28] sm:$0xff]
      %v924 = vld [vmem:[%s917 + $0x30] sm:$0xff]
      %v925 = vld [vmem:[%s917 + $0x38] sm:$0xff]
      %v926 = vld [vmem:[%s917 + $0x40] sm:$0xff]
      %v927 = vld [vmem:[%s917 + $0x48] sm:$0xff]
      %v928 = vld [vmem:[%s917 + $0x50] sm:$0xff]
      %v929 = vld [vmem:[%s917 + $0x58] sm:$0xff]
      %v930 = vld [vmem:[%s917 + $0x60] sm:$0xff]
      %v931 = vld [vmem:[%s917 + $0x68] sm:$0xff]
      %v932 = vld [vmem:[%s917 + $0x70] sm:$0xff]
      %v933 = vld [vmem:[%s917 + $0x78] sm:$0xff]
      %v934 = vstv 128
      %v935 = vadd.s32 %v203, %v934
      %v936 = vadd.s32 %v204, %v934
      %v937 = vadd.s32 %v507, %v934
      %v938 = vadd.s32 %v508, %v934
      %v939 = vadd.s32 %v509, %v934
      %v940 = vadd.s32 %v510, %v934
      %v941 = vadd.s32 %v511, %v934
      %v942 = vadd.s32 %v512, %v934
      %v943 = vadd.s32 %v513, %v934
      %v944 = vadd.s32 %v514, %v934
      %v945 = vadd.s32 %v515, %v934
      %v946 = vadd.s32 %v516, %v934
      %v947 = vadd.s32 %v517, %v934
      %v948 = vadd.s32 %v518, %v934
      %v949 = vadd.s32 %v519, %v934
      %v950 = vadd.s32 %v520, %v934
      %952 = vset.pattern.permute.xlu0 0
      %953 = vperm.xlu0 %952, %v918
      %v954 = vpop.permute.xlu0 %953
      %957 = vset.pattern.permute.xlu0 0
      %958 = vperm.xlu0 %957, %v919
      %v959 = vpop.permute.xlu0 %958
      %962 = vset.pattern.permute.xlu0 0
      %963 = vperm.xlu0 %962, %v920
      %v964 = vpop.permute.xlu0 %963
      %967 = vset.pattern.permute.xlu0 0
      %968 = vperm.xlu0 %967, %v921
      %v969 = vpop.permute.xlu0 %968
      %972 = vset.pattern.permute.xlu0 0
      %973 = vperm.xlu0 %972, %v922
      %v974 = vpop.permute.xlu0 %973
      %977 = vset.pattern.permute.xlu0 0
      %978 = vperm.xlu0 %977, %v923
      %v979 = vpop.permute.xlu0 %978
      %982 = vset.pattern.permute.xlu0 0
      %983 = vperm.xlu0 %982, %v924
      %v984 = vpop.permute.xlu0 %983
      %987 = vset.pattern.permute.xlu0 0
      %988 = vperm.xlu0 %987, %v925
      %v989 = vpop.permute.xlu0 %988
      %992 = vset.pattern.permute.xlu0 0
      %993 = vperm.xlu0 %992, %v926
      %v994 = vpop.permute.xlu0 %993
      %997 = vset.pattern.permute.xlu0 0
      %998 = vperm.xlu0 %997, %v927
      %v999 = vpop.permute.xlu0 %998
      %1002 = vset.pattern.permute.xlu0 0
      %1003 = vperm.xlu0 %1002, %v928
      %v1004 = vpop.permute.xlu0 %1003
      %1007 = vset.pattern.permute.xlu0 0
      %1008 = vperm.xlu0 %1007, %v929
      %v1009 = vpop.permute.xlu0 %1008
      %1012 = vset.pattern.permute.xlu0 0
      %1013 = vperm.xlu0 %1012, %v930
      %v1014 = vpop.permute.xlu0 %1013
      %1017 = vset.pattern.permute.xlu0 0
      %1018 = vperm.xlu0 %1017, %v931
      %v1019 = vpop.permute.xlu0 %1018
      %1022 = vset.pattern.permute.xlu0 0
      %1023 = vperm.xlu0 %1022, %v932
      %v1024 = vpop.permute.xlu0 %1023
      %1027 = vset.pattern.permute.xlu0 0
      %1028 = vperm.xlu0 %1027, %v933
      %v1029 = vpop.permute.xlu0 %1028
      %vm1031 = vcmp.gt.f32.partialorder %v954, %v340
      %vm1032 = vcmp.gt.f32.partialorder %v954, %v407
      %vm1033 = vcmp.gt.f32.partialorder %v959, %v340
      %vm1034 = vcmp.gt.f32.partialorder %v959, %v407
      %vm1035 = vcmp.gt.f32.partialorder %v964, %v340
      %vm1036 = vcmp.gt.f32.partialorder %v964, %v407
      %vm1037 = vcmp.gt.f32.partialorder %v969, %v340
      %vm1038 = vcmp.gt.f32.partialorder %v969, %v407
      %vm1039 = vcmp.gt.f32.partialorder %v974, %v340
      %vm1040 = vcmp.gt.f32.partialorder %v974, %v407
      %vm1041 = vcmp.gt.f32.partialorder %v979, %v340
      %vm1042 = vcmp.gt.f32.partialorder %v979, %v407
      %vm1043 = vcmp.gt.f32.partialorder %v984, %v340
      %vm1044 = vcmp.gt.f32.partialorder %v984, %v407
      %vm1045 = vcmp.gt.f32.partialorder %v989, %v340
      %vm1046 = vcmp.gt.f32.partialorder %v989, %v407
      %vm1047 = vcmp.gt.f32.partialorder %v994, %v340
      %vm1048 = vcmp.gt.f32.partialorder %v994, %v407
      %vm1049 = vcmp.gt.f32.partialorder %v999, %v340
      %vm1050 = vcmp.gt.f32.partialorder %v999, %v407
      %vm1051 = vcmp.gt.f32.partialorder %v1004, %v340
      %vm1052 = vcmp.gt.f32.partialorder %v1004, %v407
      %vm1053 = vcmp.gt.f32.partialorder %v1009, %v340
      %vm1054 = vcmp.gt.f32.partialorder %v1009, %v407
      %vm1055 = vcmp.gt.f32.partialorder %v1014, %v340
      %vm1056 = vcmp.gt.f32.partialorder %v1014, %v407
      %vm1057 = vcmp.gt.f32.partialorder %v1019, %v340
      %vm1058 = vcmp.gt.f32.partialorder %v1019, %v407
      %vm1059 = vcmp.gt.f32.partialorder %v1024, %v340
      %vm1060 = vcmp.gt.f32.partialorder %v1024, %v407
      %vm1061 = vcmp.gt.f32.partialorder %v1029, %v340
      %vm1062 = vcmp.gt.f32.partialorder %v1029, %v407
      %vm1063 = vcmp.eq.f32.partialorder %v954, %v340
      %vm1064 = vcmp.eq.f32.partialorder %v954, %v407
      %vm1065 = vcmp.eq.f32.partialorder %v959, %v340
      %vm1066 = vcmp.eq.f32.partialorder %v959, %v407
      %vm1067 = vcmp.eq.f32.partialorder %v964, %v340
      %vm1068 = vcmp.eq.f32.partialorder %v964, %v407
      %vm1069 = vcmp.eq.f32.partialorder %v969, %v340
      %vm1070 = vcmp.eq.f32.partialorder %v969, %v407
      %vm1071 = vcmp.eq.f32.partialorder %v974, %v340
      %vm1072 = vcmp.eq.f32.partialorder %v974, %v407
      %vm1073 = vcmp.eq.f32.partialorder %v979, %v340
      %vm1074 = vcmp.eq.f32.partialorder %v979, %v407
      %vm1075 = vcmp.eq.f32.partialorder %v984, %v340
      %vm1076 = vcmp.eq.f32.partialorder %v984, %v407
      %vm1077 = vcmp.eq.f32.partialorder %v989, %v340
      %vm1078 = vcmp.eq.f32.partialorder %v989, %v407
      %vm1079 = vcmp.eq.f32.partialorder %v994, %v340
      %vm1080 = vcmp.eq.f32.partialorder %v994, %v407
      %vm1081 = vcmp.eq.f32.partialorder %v999, %v340
      %vm1082 = vcmp.eq.f32.partialorder %v999, %v407
      %vm1083 = vcmp.eq.f32.partialorder %v1004, %v340
      %vm1084 = vcmp.eq.f32.partialorder %v1004, %v407
      %vm1085 = vcmp.eq.f32.partialorder %v1009, %v340
      %vm1086 = vcmp.eq.f32.partialorder %v1009, %v407
      %vm1087 = vcmp.eq.f32.partialorder %v1014, %v340
      %vm1088 = vcmp.eq.f32.partialorder %v1014, %v407
      %vm1089 = vcmp.eq.f32.partialorder %v1019, %v340
      %vm1090 = vcmp.eq.f32.partialorder %v1019, %v407
      %vm1091 = vcmp.eq.f32.partialorder %v1024, %v340
      %vm1092 = vcmp.eq.f32.partialorder %v1024, %v407
      %vm1093 = vcmp.eq.f32.partialorder %v1029, %v340
      %vm1094 = vcmp.eq.f32.partialorder %v1029, %v407
      %vm1095 = vcmp.lt.s32.totalorder %v935, %v505
      %vm1096 = vcmp.lt.s32.totalorder %v935, %v506
      %vm1097 = vcmp.lt.s32.totalorder %v936, %v505
      %vm1098 = vcmp.lt.s32.totalorder %v936, %v506
      %vm1099 = vcmp.lt.s32.totalorder %v937, %v505
      %vm1100 = vcmp.lt.s32.totalorder %v937, %v506
      %vm1101 = vcmp.lt.s32.totalorder %v938, %v505
      %vm1102 = vcmp.lt.s32.totalorder %v938, %v506
      %vm1103 = vcmp.lt.s32.totalorder %v939, %v505
      %vm1104 = vcmp.lt.s32.totalorder %v939, %v506
      %vm1105 = vcmp.lt.s32.totalorder %v940, %v505
      %vm1106 = vcmp.lt.s32.totalorder %v940, %v506
      %vm1107 = vcmp.lt.s32.totalorder %v941, %v505
      %vm1108 = vcmp.lt.s32.totalorder %v941, %v506
      %vm1109 = vcmp.lt.s32.totalorder %v942, %v505
      %vm1110 = vcmp.lt.s32.totalorder %v942, %v506
      %vm1111 = vcmp.lt.s32.totalorder %v943, %v505
      %vm1112 = vcmp.lt.s32.totalorder %v943, %v506
      %vm1113 = vcmp.lt.s32.totalorder %v944, %v505
      %vm1114 = vcmp.lt.s32.totalorder %v944, %v506
      %vm1115 = vcmp.lt.s32.totalorder %v945, %v505
      %vm1116 = vcmp.lt.s32.totalorder %v945, %v506
      %vm1117 = vcmp.lt.s32.totalorder %v946, %v505
      %vm1118 = vcmp.lt.s32.totalorder %v946, %v506
      %vm1119 = vcmp.lt.s32.totalorder %v947, %v505
      %vm1120 = vcmp.lt.s32.totalorder %v947, %v506
      %vm1121 = vcmp.lt.s32.totalorder %v948, %v505
      %vm1122 = vcmp.lt.s32.totalorder %v948, %v506
      %vm1123 = vcmp.lt.s32.totalorder %v949, %v505
      %vm1124 = vcmp.lt.s32.totalorder %v949, %v506
      %vm1125 = vcmp.lt.s32.totalorder %v950, %v505
      %vm1126 = vcmp.lt.s32.totalorder %v950, %v506
      %vm1127 = vmand %vm1063, %vm1095
      %vm1128 = vmand %vm1064, %vm1096
      %vm1129 = vmand %vm1065, %vm1097
      %vm1130 = vmand %vm1066, %vm1098
      %vm1131 = vmand %vm1067, %vm1099
      %vm1132 = vmand %vm1068, %vm1100
      %vm1133 = vmand %vm1069, %vm1101
      %vm1134 = vmand %vm1070, %vm1102
      %vm1135 = vmand %vm1071, %vm1103
      %vm1136 = vmand %vm1072, %vm1104
      %vm1137 = vmand %vm1073, %vm1105
      %vm1138 = vmand %vm1074, %vm1106
      %vm1139 = vmand %vm1075, %vm1107
      %vm1140 = vmand %vm1076, %vm1108
      %vm1141 = vmand %vm1077, %vm1109
      %vm1142 = vmand %vm1078, %vm1110
      %vm1143 = vmand %vm1079, %vm1111
      %vm1144 = vmand %vm1080, %vm1112
      %vm1145 = vmand %vm1081, %vm1113
      %vm1146 = vmand %vm1082, %vm1114
      %vm1147 = vmand %vm1083, %vm1115
      %vm1148 = vmand %vm1084, %vm1116
      %vm1149 = vmand %vm1085, %vm1117
      %vm1150 = vmand %vm1086, %vm1118
      %vm1151 = vmand %vm1087, %vm1119
      %vm1152 = vmand %vm1088, %vm1120
      %vm1153 = vmand %vm1089, %vm1121
      %vm1154 = vmand %vm1090, %vm1122
      %vm1155 = vmand %vm1091, %vm1123
      %vm1156 = vmand %vm1092, %vm1124
      %vm1157 = vmand %vm1093, %vm1125
      %vm1158 = vmand %vm1094, %vm1126
      %vm1159 = vmor %vm1031, %vm1127
      %vm1160 = vmor %vm1032, %vm1128
      %vm1161 = vmor %vm1033, %vm1129
      %vm1162 = vmor %vm1034, %vm1130
      %vm1163 = vmor %vm1035, %vm1131
      %vm1164 = vmor %vm1036, %vm1132
      %vm1165 = vmor %vm1037, %vm1133
      %vm1166 = vmor %vm1038, %vm1134
      %vm1167 = vmor %vm1039, %vm1135
      %vm1168 = vmor %vm1040, %vm1136
      %vm1169 = vmor %vm1041, %vm1137
      %vm1170 = vmor %vm1042, %vm1138
      %vm1171 = vmor %vm1043, %vm1139
      %vm1172 = vmor %vm1044, %vm1140
      %vm1173 = vmor %vm1045, %vm1141
      %vm1174 = vmor %vm1046, %vm1142
      %vm1175 = vmor %vm1047, %vm1143
      %vm1176 = vmor %vm1048, %vm1144
      %vm1177 = vmor %vm1049, %vm1145
      %vm1178 = vmor %vm1050, %vm1146
      %vm1179 = vmor %vm1051, %vm1147
      %vm1180 = vmor %vm1052, %vm1148
      %vm1181 = vmor %vm1053, %vm1149
      %vm1182 = vmor %vm1054, %vm1150
      %vm1183 = vmor %vm1055, %vm1151
      %vm1184 = vmor %vm1056, %vm1152
      %vm1185 = vmor %vm1057, %vm1153
      %vm1186 = vmor %vm1058, %vm1154
      %vm1187 = vmor %vm1059, %vm1155
      %vm1188 = vmor %vm1060, %vm1156
      %vm1189 = vmor %vm1061, %vm1157
      %vm1190 = vmor %vm1062, %vm1158
      %v1191 = vsel %vm1159, 1, 0
      %v1192 = vsel %vm1160, 1, 0
      %v1193 = vsel %vm1161, 1, 0
      %v1194 = vsel %vm1162, 1, 0
      %v1195 = vsel %vm1163, 1, 0
      %v1196 = vsel %vm1164, 1, 0
      %v1197 = vsel %vm1165, 1, 0
      %v1198 = vsel %vm1166, 1, 0
      %v1199 = vsel %vm1167, 1, 0
      %v1200 = vsel %vm1168, 1, 0
      %v1201 = vsel %vm1169, 1, 0
      %v1202 = vsel %vm1170, 1, 0
      %v1203 = vsel %vm1171, 1, 0
      %v1204 = vsel %vm1172, 1, 0
      %v1205 = vsel %vm1173, 1, 0
      %v1206 = vsel %vm1174, 1, 0
      %v1207 = vsel %vm1175, 1, 0
      %v1208 = vsel %vm1176, 1, 0
      %v1209 = vsel %vm1177, 1, 0
      %v1210 = vsel %vm1178, 1, 0
      %v1211 = vsel %vm1179, 1, 0
      %v1212 = vsel %vm1180, 1, 0
      %v1213 = vsel %vm1181, 1, 0
      %v1214 = vsel %vm1182, 1, 0
      %v1215 = vsel %vm1183, 1, 0
      %v1216 = vsel %vm1184, 1, 0
      %v1217 = vsel %vm1185, 1, 0
      %v1218 = vsel %vm1186, 1, 0
      %v1219 = vsel %vm1187, 1, 0
      %v1220 = vsel %vm1188, 1, 0
      %v1221 = vsel %vm1189, 1, 0
      %v1222 = vsel %vm1190, 1, 0
      %v1223 = vcvt.s32.f32 %v1191
      %v1224 = vcvt.s32.f32 %v1192
      %v1225 = vcvt.s32.f32 %v1193
      %v1226 = vcvt.s32.f32 %v1194
      %v1227 = vcvt.s32.f32 %v1195
      %v1228 = vcvt.s32.f32 %v1196
      %v1229 = vcvt.s32.f32 %v1197
      %v1230 = vcvt.s32.f32 %v1198
      %v1231 = vcvt.s32.f32 %v1199
      %v1232 = vcvt.s32.f32 %v1200
      %v1233 = vcvt.s32.f32 %v1201
      %v1234 = vcvt.s32.f32 %v1202
      %v1235 = vcvt.s32.f32 %v1203
      %v1236 = vcvt.s32.f32 %v1204
      %v1237 = vcvt.s32.f32 %v1205
      %v1238 = vcvt.s32.f32 %v1206
      %v1239 = vcvt.s32.f32 %v1207
      %v1240 = vcvt.s32.f32 %v1208
      %v1241 = vcvt.s32.f32 %v1209
      %v1242 = vcvt.s32.f32 %v1210
      %v1243 = vcvt.s32.f32 %v1211
      %v1244 = vcvt.s32.f32 %v1212
      %v1245 = vcvt.s32.f32 %v1213
      %v1246 = vcvt.s32.f32 %v1214
      %v1247 = vcvt.s32.f32 %v1215
      %v1248 = vcvt.s32.f32 %v1216
      %v1249 = vcvt.s32.f32 %v1217
      %v1250 = vcvt.s32.f32 %v1218
      %v1251 = vcvt.s32.f32 %v1219
      %v1252 = vcvt.s32.f32 %v1220
      %v1253 = vcvt.s32.f32 %v1221
      %v1254 = vcvt.s32.f32 %v1222
      %v1255 = vpack.c.bf16 %v1225, %v1223
      %v1256 = vpack.c.bf16 %v1226, %v1224
      %v1257 = vpack.c.bf16 %v1229, %v1227
      %v1258 = vpack.c.bf16 %v1230, %v1228
      %v1259 = vpack.c.bf16 %v1233, %v1231
      %v1260 = vpack.c.bf16 %v1234, %v1232
      %v1261 = vpack.c.bf16 %v1237, %v1235
      %v1262 = vpack.c.bf16 %v1238, %v1236
      %v1263 = vpack.c.bf16 %v1241, %v1239
      %v1264 = vpack.c.bf16 %v1242, %v1240
      %v1265 = vpack.c.bf16 %v1245, %v1243
      %v1266 = vpack.c.bf16 %v1246, %v1244
      %v1267 = vpack.c.bf16 %v1249, %v1247
      %v1268 = vpack.c.bf16 %v1250, %v1248
      %v1269 = vpack.c.bf16 %v1253, %v1251
      %v1270 = vpack.c.bf16 %v1254, %v1252
      %1271 = vmatprep.subr.bf16.mxu0 %v1256
      %1272 = vmatpush1.bf16.msra.mxu0 %v1255
      %1273 = vmatprep.subr.bf16.mxu0 %v1258
      %1274 = vmatpush1.bf16.msra.mxu0 %v1257
      %1275 = vmatprep.subr.bf16.mxu0 %v1260
      %1276 = vmatpush1.bf16.msra.mxu0 %v1259
      %1277 = vmatprep.subr.bf16.mxu0 %v1262
      %1278 = vmatpush1.bf16.msra.mxu0 %v1261
      %1279 = vmatprep.subr.bf16.mxu0 %v1264
      %1280 = vmatpush1.bf16.msra.mxu0 %v1263
      %1281 = vmatprep.subr.bf16.mxu0 %v1266
      %1282 = vmatpush1.bf16.msra.mxu0 %v1265
      %1283 = vmatprep.subr.bf16.mxu0 %v1268
      %1284 = vmatpush1.bf16.msra.mxu0 %v1267
      %1285 = vmatprep.subr.bf16.mxu0 %v1270
      %1286 = vmatpush1.bf16.msra.mxu0 %v1269
      %1287 = vmatprep.subr.bf16.mxu0 0
      %1288 = vmatpush1.bf16.msra.mxu0 0
      %1289 = vmatprep.subr.bf16.mxu0 0
      %1290 = vmatpush1.bf16.msra.mxu0 0
      %1291 = vmatprep.subr.bf16.mxu0 0
      %1292 = vmatpush1.bf16.msra.mxu0 0
      %1293 = vmatprep.subr.bf16.mxu0 0
      %1294 = vmatpush1.bf16.msra.mxu0 0
      %1295 = vmatprep.subr.bf16.mxu0 0
      %1296 = vmatpush1.bf16.msra.mxu0 0
      %1297 = vmatprep.subr.bf16.mxu0 0
      %1298 = vmatpush1.bf16.msra.mxu0 0
      %1299 = vmatprep.subr.bf16.mxu0 0
      %1300 = vmatpush1.bf16.msra.mxu0 0
      %1301 = vmatprep.subr.bf16.mxu0 0
      %1302 = vmatpush1.bf16.msra.mxu0 0
      %1303 = vmatprep.mubr.bf16.mxu0 0
      %1304 = vmatmul.mubr.bf16.gmra.mrb[0].mxu0 1065369472
      %v1305 = vpop.f32.mrb[0].mxu0
      %v1306 = vadd.f32 0.0, %v1305
      %v1307 = vpop.f32.mrb[0].mxu0
      %v1308 = vadd.f32 0.0, %v1307
      %v1309 = vpop.f32.mrb[0].mxu0
      %v1310 = vpop.f32.mrb[0].mxu0
      %1311 = vdwg.mxu0
      %v1312 = vadd.f32 %v915, %v1306
      %v1313 = vadd.f32 %v916, %v1308
      %v1314 = vcvt.s32.f32 %v207
      %v1315 = vcvt.s32.f32 %v208
      %v1318 = vrot.slane %v1314, 6
      %v1319 = vrot.slane %v1315, 6
      %vm1322 = vcmask 1040384
      %v1323 = vsel %vm1322, %v1318, 0.0
      %v1324 = vsel %vm1322, %v1319, 0.0
      %v1325 = vadd.f32 %v1323, %v1324
      %1326 = vadd.xlane.f32.xlu0 %v1325
      %v1327 = vpop.xlane.xlu0 %1326
      %v1328 = vrot.slane %v1327, 4
      %v1329 = vadd.f32 %v1327, %v1328
      %v1330 = vrot.slane %v1329, 2
      %v1331 = vadd.f32 %v1329, %v1330
      %v1332 = vrot.slane %v1331, 1
      %v1333 = vadd.f32 %v1331, %v1332
      %s1334 = vtos %v1333
      %v1335 = vcvt.s32.f32 %v245
      %v1336 = vcvt.s32.f32 %v246
      %v1339 = vrot.slane %v1335, 6
      %v1340 = vrot.slane %v1336, 6
      %v1343 = vsel %vm1322, %v1339, 0.0
      %v1344 = vsel %vm1322, %v1340, 0.0
      %v1345 = vadd.f32 %v1343, %v1344
      %1346 = vadd.xlane.f32.xlu0 %v1345
      %v1347 = vpop.xlane.xlu0 %1346
      %v1348 = vrot.slane %v1347, 4
      %v1349 = vadd.f32 %v1347, %v1348
      %v1350 = vrot.slane %v1349, 2
      %v1351 = vadd.f32 %v1349, %v1350
      %v1352 = vrot.slane %v1351, 1
      %v1353 = vadd.f32 %v1351, %v1352
      %s1354 = vtos %v1353
      %s1355 = smul.f32 %s1334, 7.0
      %s1356 = smin.f32 %s1355, 255.0
      %v1357 = vstv %s1356
      %vm1358 = vcmp.lt.f32.partialorder %v1312, %v1357
      %vm1359 = vcmp.lt.f32.partialorder %v1313, %v1357
      %v1360 = vsel %vm1358, 1, 0
      %v1361 = vsel %vm1359, 1, 0
      %v1362 = vrot.slane %v1360, 2
      %v1363 = vrot.slane %v1361, 2
      %vm1364 = vcmp.ne.s32.totalorder %v1362, 0
      %vm1365 = vcmp.ne.s32.totalorder %v1363, 0
      %vm1366 = vmor %vm170, %vm1364
      %vm1367 = vmor %vm171, %vm1365
      %v1368 = vsel %vm1366, %v333, 0.0
      %v1369 = vsel %vm1367, %v334, 0.0
      %v1372 = vrot.slane %v1368, 6
      %v1373 = vrot.slane %v1369, 6
      %v1376 = vsel %vm1322, %v1372, 0.0
      %v1377 = vsel %vm1322, %v1373, 0.0
      %v1378 = vadd.f32 %v1376, %v1377
      %1379 = vadd.xlane.f32.xlu0 %v1378
      %v1380 = vpop.xlane.xlu0 %1379
      %v1381 = vrot.slane %v1380, 4
      %v1382 = vadd.f32 %v1380, %v1381
      %v1383 = vrot.slane %v1382, 2
      %v1384 = vadd.f32 %v1382, %v1383
      %v1385 = vrot.slane %v1384, 1
      %v1386 = vadd.f32 %v1384, %v1385
      %s1387 = vtos %v1386
      %vm1388 = vcmp.eq.s32.totalorder %v505, 0
      %v1389 = vstv %s238
      %v1390 = vsel %vm1388, %v1389, 0.0
      %vm1391 = vcmp.eq.s32.totalorder %v505, 1
      %v1392 = vstv %s1387
      %v1393 = vsel %vm1391, %v1392, 0.0
      %v1394 = vadd.f32 %v1390, %v1393
      %vm1395 = vcmp.eq.s32.totalorder %v505, 2
      %v1396 = vstv %s276
      %v1397 = vsel %vm1395, %v1396, 0.0
      %v1398 = vadd.f32 %v1394, %v1397
      %vm1399 = vcmp.eq.s32.totalorder %v505, 3
      %v1400 = vstv %s1334
      %v1401 = vsel %vm1399, %v1400, 0.0
      %v1402 = vadd.f32 %v1398, %v1401
      %vm1403 = vcmp.eq.s32.totalorder %v505, 4
      %v1404 = vstv %s1354
      %v1405 = vsel %vm1403, %v1404, 0.0
      %v1406 = vadd.f32 %v1402, %v1405
      %1407 = vst [vmem:[%s159] sm:$0x1] %v1406
      %p1408 = scmp.lt.s32.totalorder %s13, 1
      %s1409 = scalar_select %p1408, %s13, 1
      %s1410 = scalar_lea.vmem %s2, %s1409
      // Predicated region
      $region29: #{_multibox_loss_pallas.1} parent=27 // pred_check
        %p1411 = pneg %p83
      $region30: #{_multibox_loss_pallas.1} parent=27 // pred_check_branch
        %1413 = sbr.rel (%p1411) target = $region32
      $region31: #{_multibox_loss_pallas.1} parent=27 // pred_region
        _
      $region32: #{_multibox_loss_pallas.1} parent=27 // pred_fallthru
        _
    $region28: #{_multibox_loss_pallas.1} parent=5 // pred_fallthru
      _
    %p1414 = scmp.le.s32.totalorder 2, %s8
    // Predicated region
    $region33: #{_multibox_loss_pallas.1} parent=5 // pred_check
      %p1415 = pneg %p1414
    $region34: #{_multibox_loss_pallas.1} parent=5 // pred_check_branch
      %1417 = sbr.rel (%p1415) target = $region36
    $region35: #{_multibox_loss_pallas.1} parent=5 // pred_region
      %s1418 = ssub.s32 %s8, 2
      // Predicated region
      $region37: #{_multibox_loss_pallas.1} parent=35 // pred_check
        %p1419 = pneg %p89
      $region38: #{_multibox_loss_pallas.1} parent=35 // pred_check_branch
        %1421 = sbr.rel (%p1419) target = $region40
      $region39: #{_multibox_loss_pallas.1} parent=35 // pred_region
        %p1422 = scmp.lt.s32.totalorder %s14, 1
        %s1423 = scalar_select %p1422, %s14, 1
        %s1424 = scalar_lea.vmem %s2, %s1423
      $region40: #{_multibox_loss_pallas.1} parent=35 // pred_fallthru
        _
    $region36: #{_multibox_loss_pallas.1} parent=5 // pred_fallthru
      _
  $region6: #{_multibox_loss_pallas.1} parent=0 // loop_footer
    %s12 = sadd.s32 1, %s8
  $region7: #{_multibox_loss_pallas.1} parent=0 // loop_footer_branch
    %7 = sbr.rel target = $region3
  $region8: #{_multibox_loss_pallas.1} parent=0 // loop_exit
    _

</llo_original>
